<compile_context>
chip_gen: v5e
topology: v5e:2x2
jax: 0.10.0
libtpu: 0.0.40
codegen_flags: <defaults>
</compile_context>

<pallas_src>
import functools

import jax
import jax.numpy as jnp
import numpy as np
from jax.experimental import pallas as pl
from jax.experimental.pallas import tpu as pltpu


# --------------------------------------------------------------------------- #
# Sizing helpers                                                               #
# --------------------------------------------------------------------------- #
def _vmem_capacity_bytes():
    try:
        return int(pltpu.get_tpu_info().vmem_capacity_bytes)
    except Exception:
        return 64 * 1024 * 1024  # conservative default = v7x per-TensorCore VMEM


def _pick_chunk(num_voxels, bytes_per_voxel, budget):
    """Largest voxel chunk (multiple of 128 when possible) fitting `budget`."""
    max_vc = max(128, budget // max(bytes_per_voxel, 1))
    if num_voxels <= max_vc:
        return num_voxels
    start = (max_vc // 128) * 128
    for vc in range(start, 127, -128):
        if num_voxels % vc == 0:
            return vc
    for vc in range(min(num_voxels, max_vc), 0, -1):   # rare correctness fallback
        if num_voxels % vc == 0:
            return vc
    return num_voxels


# --------------------------------------------------------------------------- #
# Kernel 1: absolute sample positions + clamped base-corner flat index         #
# --------------------------------------------------------------------------- #
def _index_kernel(coords_ref, flow_ref, idx_ref, locs_ref, *, dims):
    D, H, W = dims
    # Identity grid + flow (the [-1,1] normalise / un-normalise round trip of
    # grid_sample with align_corners=True cancels exactly).
    locs = coords_ref[...].astype(jnp.float32) + flow_ref[...].astype(jnp.float32)
    locs_ref[...] = locs                              # (1, 3, VC): x(=w), y(=h), z(=d)

    xs, ys, zs = locs[0, 0:1, :], locs[0, 1:2, :], locs[0, 2:3, :]
    # Clamp the floor in FLOAT (avoids int32 overflow for wild flows), so the 8
    # slots base + {0,1,W,...} are always valid flat indices.
    x0 = jnp.clip(jnp.floor(xs), 0.0, float(max(W - 2, 0))).astype(jnp.int32)
    y0 = jnp.clip(jnp.floor(ys), 0.0, float(max(H - 2, 0))).astype(jnp.int32)
    z0 = jnp.clip(jnp.floor(zs), 0.0, float(max(D - 2, 0))).astype(jnp.int32)
    idx_ref[0, :, :] = (z0 * H + y0) * W + x0


# --------------------------------------------------------------------------- #
# Kernel 2: recompute trilinear weights + weighted 8-slot reduction            #
# --------------------------------------------------------------------------- #
def _combine_kernel(locs_ref, g_ref, out_ref, *, dims):
    D, H, W = dims
    locs = locs_ref[...].astype(jnp.float32)          # (1, 3, VC)

    def axis_weights(p, n):
        # Weights of the two gathered slots (at clamped coords pc, pc+1) such
        # that the weighted sum equals grid_sample's zeros-padded trilinear
        # interpolation: slot weight is (1-t)/t only when its coordinate equals
        # floor(p)/floor(p)+1, else 0 (out-of-bounds corners vanish).
        p0f = jnp.floor(p)
        t = p - p0f
        p0 = jnp.clip(p0f, -2.0, float(n)).astype(jnp.int32)
        pc = jnp.clip(p0, 0, max(n - 2, 0))
        m_eq = pc == p0            # interior
        m_dn = pc == p0 + 1        # floor clamped up   (p0 == -1)
        m_up = pc == p0 - 1        # floor clamped down (p0 == n-1)
        w0 = jnp.where(m_eq, 1.0 - t, jnp.where(m_dn, t, 0.0))
        w1 = jnp.where(m_eq, t, jnp.where(m_up, 1.0 - t, 0.0))
        return w0, w1

    wx0, wx1 = axis_weights(locs[0, 0:1, :], W)
    wy0, wy1 = axis_weights(locs[0, 1:2, :], H)
    wz0, wz1 = axis_weights(locs[0, 2:3, :], D)

    # Hoist the z*y products (4 muls) and reuse for the 8 slots.
    wzy = (wz0 * wy0, wz0 * wy1, wz1 * wy0, wz1 * wy1)
    wx = (wx0, wx1)

    acc = jnp.zeros_like(wx0)
    for s in range(8):                                 # slot = (i<<2)|(j<<1)|k
        i, j, k = (s >> 2) & 1, (s >> 1) & 1, s & 1
        acc = acc + (wzy[2 * i + j] * wx[k]) * g_ref[0, 0, s:s + 1, :].astype(jnp.float32)
    out_ref[0, 0, :, :] = acc.astype(out_ref.dtype)


# --------------------------------------------------------------------------- #
# Wrapper: SpatialTransformer(size, mode='bilinear', unit=False).forward       #
# --------------------------------------------------------------------------- #
@functools.partial(jax.jit, static_argnames=("mode", "unit"))
def spatial_transformer_forward(src, flow, mode="bilinear", unit=False):
    if mode != "bilinear" or unit:
        # TODO(synk): mode='nearest' and unit=True (border padding) are simple
        # coordinate/weight tweaks but are not implemented here.
        raise NotImplementedError("only mode='bilinear', unit=False is implemented")

    B, C, D, H, W = src.shape
    assert flow.shape == (B, 3, D, H, W), flow.shape
    S = D * H * W
    assert S < 2 ** 31, "int32 flat indices would overflow"
    itemsize = src.dtype.itemsize

    vmem_cap = _vmem_capacity_bytes()
    vmem_limit = int(min(vmem_cap // 2, 96 * 1024 * 1024))
    # double-buffered per-step bytes/voxel of the heavier (combine) kernel
    bytes_per_voxel = 2 * (12 + 8 * itemsize + itemsize)
    VC = _pick_chunk(S, bytes_per_voxel, vmem_limit // 2)
    n_chunk = S // VC

    src_flat = src.reshape(B, C, S)
    flow_flat = flow.reshape(B, 3, S)

    # Identity grid in the module's channel order [x(=w), y(=h), z(=d)],
    # flattened, shared across the batch (tiny: 12 B/voxel, built once).
    wi = jnp.broadcast_to(jnp.arange(W, dtype=jnp.float32).reshape(1, 1, W), (D, H, W))
    hi = jnp.broadcast_to(jnp.arange(H, dtype=jnp.float32).reshape(1, H, 1), (D, H, W))
    di = jnp.broadcast_to(jnp.arange(D, dtype=jnp.float32).reshape(D, 1, 1), (D, H, W))
    coords = jnp.stack([wi, hi, di]).reshape(1, 3, S)

    # ---- Kernel 1: sample positions + clamped base corner flat index ----------
    base_idx, locs = pl.pallas_call(
        functools.partial(_index_kernel, dims=(D, H, W)),
        out_shape=[
            jax.ShapeDtypeStruct((B, 1, S), jnp.int32),
            jax.ShapeDtypeStruct((B, 3, S), jnp.float32),
        ],
        grid=(B, n_chunk),
        in_specs=[
            pl.BlockSpec((1, 3, VC), lambda b, v: (0, 0, v)),   # coords
            pl.BlockSpec((1, 3, VC), lambda b, v: (b, 0, v)),   # flow
        ],
        out_specs=[
            pl.BlockSpec((1, 1, VC), lambda b, v: (b, 0, v)),   # base index
            pl.BlockSpec((1, 3, VC), lambda b, v: (b, 0, v)),   # sample positions
        ],
        compiler_params=pltpu.CompilerParams(
            dimension_semantics=("parallel", "parallel"),
            vmem_limit_bytes=vmem_limit),
        cost_estimate=pl.CostEstimate(
            flops=30 * B * S, transcendentals=0,
            bytes_accessed=(12 + 12 + 4 + 12) * B * S),
    )(coords, flow_flat)

    # ---- XLA gather of the 8 corner values (base + static offsets, in-bounds).
    # TODO(synk): no Pallas-TPU vector-gather primitive -> one XLA take / batch.
    HW = H * W
    offs = jnp.array([0, 1, W, W + 1, HW, HW + 1, HW + W, HW + W + 1],
                     dtype=jnp.int32).reshape(1, 8, 1)
    corner_idx = (base_idx + offs).reshape(B, 8 * S)            # always in [0, S)
    gathered = jax.vmap(lambda s_, i_: jnp.take(s_, i_, axis=1, mode="clip"))(
        src_flat, corner_idx)                                   # (B, C, 8*S), src.dtype
    gathered = gathered.reshape(B, C, 8, S)

    # ---- Kernel 2: recompute weights from positions + weighted 8-slot sum -----
    out = pl.pallas_call(
        functools.partial(_combine_kernel, dims=(D, H, W)),
        out_shape=jax.ShapeDtypeStruct((B, C, 1, S), src.dtype),
        grid=(B, n_chunk, C),          # C innermost -> `locs` block reused across C
        in_specs=[
            pl.BlockSpec((1, 3, VC), lambda b, v, c: (b, 0, v)),      # positions
            pl.BlockSpec((1, 1, 8, VC), lambda b, v, c: (b, c, 0, v)),  # corners
        ],
        out_specs=pl.BlockSpec((1, 1, 1, VC), lambda b, v, c: (b, c, 0, v)),
        compiler_params=pltpu.CompilerParams(
            dimension_semantics=("parallel", "parallel", "arbitrary"),
            vmem_limit_bytes=vmem_limit),
        cost_estimate=pl.CostEstimate(
            flops=90 * B * C * S, transcendentals=0,
            bytes_accessed=(12 + (8 + 1) * C * itemsize) * B * S),
    )(locs, gathered)
    return out.reshape(B, C, D, H, W)


# --------------------------------------------------------------------------- #
# Pure-NumPy reference: literal port of SpatialTransformer.forward             #
# --------------------------------------------------------------------------- #
def _grid_sample_reference(src, flow):
    B, C, D, H, W = src.shape
    d_idx, h_idx, w_idx = np.meshgrid(
        np.arange(D), np.arange(H), np.arange(W), indexing="ij")
    grid = np.stack([w_idx, h_idx, d_idx], axis=0)[None].astype(np.float32)
    new_locs = grid + flow                                     # (B,3,D,H,W)
    shape = (D, H, W)
    for i in range(3):
        new_locs[:, i] = 2.0 * new_locs[:, i] / (shape[-i - 1] - 1) - 1.0
    locs = np.transpose(new_locs, (0, 2, 3, 4, 1))             # (B,D,H,W,3) = (x,y,z)
    x = (locs[..., 0] + 1.0) * 0.5 * (W - 1)
    y = (locs[..., 1] + 1.0) * 0.5 * (H - 1)
    z = (locs[..., 2] + 1.0) * 0.5 * (D - 1)
    x0f, y0f, z0f = np.floor(x), np.floor(y), np.floor(z)
    tx, ty, tz = x - x0f, y - y0f, z - z0f
    x0, y0, z0 = x0f.astype(np.int64), y0f.astype(np.int64), z0f.astype(np.int64)
    bb = np.arange(B)[:, None, None, None, None]
    cc = np.arange(C)[None, :, None, None, None]
    out = np.zeros((B, C, D, H, W), np.float32)
    for i in (0, 1):
        for j in (0, 1):
            for k in (0, 1):
                cz, cy, cx = z0 + i, y0 + j, x0 + k
                w = ((tz if i else 1 - tz)
                     * (ty if j else 1 - ty)
                     * (tx if k else 1 - tx))
                inb = ((cx >= 0) & (cx < W) & (cy >= 0) & (cy < H)
                       & (cz >= 0) & (cz < D))
                v = src[bb, cc,
                        np.clip(cz, 0, D - 1)[:, None],
                        np.clip(cy, 0, H - 1)[:, None],
                        np.clip(cx, 0, W - 1)[:, None]]
                out += np.where(inb, w, 0.0)[:, None] * v
    return out


if __name__ == "__main__":
    key = jax.random.PRNGKey(0)
    k_src, k_flow = jax.random.split(key)
    B, C, D, H, W = 2, 3, 8, 12, 16
    src = jax.random.normal(k_src, (B, C, D, H, W), dtype=jnp.float32)
    flow = 3.0 * jax.random.normal(k_flow, (B, 3, D, H, W), dtype=jnp.float32)

    out = spatial_transformer_forward(src, flow)
    out = jax.block_until_ready(out)

    ref = _grid_sample_reference(np.asarray(src), np.asarray(flow))
    assert out.shape == (B, C, D, H, W), out.shape
    max_err = float(np.max(np.abs(np.asarray(out) - ref)))
    assert np.allclose(np.asarray(out), ref, atol=1e-3, rtol=1e-3), max_err
    print("KERNEL_OK")
</pallas_src>

<mosaic_0001>
module attributes {stable_mosaic.version = 11 : i64} {
  func.func @_index_kernel(%arg0: i32, %arg1: i32, %arg2: memref<1x3x1536xf32, #tpu.memory_space<vmem>>, %arg3: memref<1x3x1536xf32, #tpu.memory_space<vmem>>, %arg4: memref<1x1x1536xi32, #tpu.memory_space<vmem>>, %arg5: memref<1x3x1536xf32, #tpu.memory_space<vmem>>) attributes {dimension_semantics = [#tpu.dimension_semantics<parallel>, #tpu.dimension_semantics<parallel>], iteration_bounds = array<i64: 2, 1>, scalar_prefetch = 0 : i64, scratch_operands = 0 : i64, tpu.core_type = #tpu.core_type<tc>, window_params = [{transform_indices = @transform_0, window_bounds = array<i64: 1, 3, 1536>}, {transform_indices = @transform_1, window_bounds = array<i64: 1, 3, 1536>}, {transform_indices = @transform_2, window_bounds = array<i64: 1, 1, 1536>}, {transform_indices = @transform_3, window_bounds = array<i64: 1, 3, 1536>}]} {
    %c0 = arith.constant 0 : index
    %c0_0 = arith.constant 0 : index
    %c0_1 = arith.constant 0 : index
    %0 = vector.load %arg2[%c0, %c0_0, %c0_1] : memref<1x3x1536xf32, #tpu.memory_space<vmem>>, vector<1x3x1536xf32>
    %c0_2 = arith.constant 0 : index
    %c0_3 = arith.constant 0 : index
    %c0_4 = arith.constant 0 : index
    %1 = vector.load %arg3[%c0_2, %c0_3, %c0_4] : memref<1x3x1536xf32, #tpu.memory_space<vmem>>, vector<1x3x1536xf32>
    %2 = arith.addf %0, %1 : vector<1x3x1536xf32>
    %c0_5 = arith.constant 0 : index
    %c0_6 = arith.constant 0 : index
    %c0_7 = arith.constant 0 : index
    %3 = vector.load %arg5[%c0_5, %c0_6, %c0_7] : memref<1x3x1536xf32, #tpu.memory_space<vmem>>, vector<1x3x1536xf32>
    tpu.vector_store %arg5[%c0_5, %c0_6, %c0_7], %2 {strides = array<i32>} : memref<1x3x1536xf32, #tpu.memory_space<vmem>>, vector<1x3x1536xf32>,
    %4 = vector.extract_strided_slice %2 {offsets = [0, 0, 0], sizes = [1, 1, 1536], strides = [1, 1, 1]} : vector<1x3x1536xf32> to vector<1x1x1536xf32>
    %5 = vector.shape_cast %4 : vector<1x1x1536xf32> to vector<1x1536xf32>
    %6 = vector.extract_strided_slice %2 {offsets = [0, 1, 0], sizes = [1, 1, 1536], strides = [1, 1, 1]} : vector<1x3x1536xf32> to vector<1x1x1536xf32>
    %7 = vector.shape_cast %6 : vector<1x1x1536xf32> to vector<1x1536xf32>
    %8 = vector.extract_strided_slice %2 {offsets = [0, 2, 0], sizes = [1, 1, 1536], strides = [1, 1, 1]} : vector<1x3x1536xf32> to vector<1x1x1536xf32>
    %9 = vector.shape_cast %8 : vector<1x1x1536xf32> to vector<1x1536xf32>
    %10 = math.floor %5 : vector<1x1536xf32>
    %cst = arith.constant 0.000000e+00 : f32
    %cst_8 = arith.constant 1.400000e+01 : f32
    %11 = vector.broadcast %cst : f32 to vector<1x1536xf32>
    %12 = arith.maximumf %11, %10 : vector<1x1536xf32>
    %13 = vector.broadcast %cst_8 : f32 to vector<1x1536xf32>
    %14 = arith.minimumf %13, %12 : vector<1x1536xf32>
    %15 = arith.fptosi %14 : vector<1x1536xf32> to vector<1x1536xi32>
    %16 = math.floor %7 : vector<1x1536xf32>
    %cst_9 = arith.constant 0.000000e+00 : f32
    %cst_10 = arith.constant 1.000000e+01 : f32
    %17 = vector.broadcast %cst_9 : f32 to vector<1x1536xf32>
    %18 = arith.maximumf %17, %16 : vector<1x1536xf32>
    %19 = vector.broadcast %cst_10 : f32 to vector<1x1536xf32>
    %20 = arith.minimumf %19, %18 : vector<1x1536xf32>
    %21 = arith.fptosi %20 : vector<1x1536xf32> to vector<1x1536xi32>
    %22 = math.floor %9 : vector<1x1536xf32>
    %cst_11 = arith.constant 0.000000e+00 : f32
    %cst_12 = arith.constant 6.000000e+00 : f32
    %23 = vector.broadcast %cst_11 : f32 to vector<1x1536xf32>
    %24 = arith.maximumf %23, %22 : vector<1x1536xf32>
    %25 = vector.broadcast %cst_12 : f32 to vector<1x1536xf32>
    %26 = arith.minimumf %25, %24 : vector<1x1536xf32>
    %27 = arith.fptosi %26 : vector<1x1536xf32> to vector<1x1536xi32>
    %c12_i32 = arith.constant 12 : i32
    %28 = vector.broadcast %c12_i32 : i32 to vector<1x1536xi32>
    %29 = arith.muli %27, %28 : vector<1x1536xi32>
    %30 = arith.addi %29, %21 : vector<1x1536xi32>
    %c16_i32 = arith.constant 16 : i32
    %31 = vector.broadcast %c16_i32 : i32 to vector<1x1536xi32>
    %32 = arith.muli %30, %31 : vector<1x1536xi32>
    %33 = arith.addi %32, %15 : vector<1x1536xi32>
    %c0_13 = arith.constant 0 : index
    %c0_14 = arith.constant 0 : index
    %c0_15 = arith.constant 0 : index
    %34 = vector.load %arg4[%c0_13, %c0_14, %c0_15] : memref<1x1x1536xi32, #tpu.memory_space<vmem>>, vector<1x1x1536xi32>
    %35 = vector.shape_cast %34 : vector<1x1x1536xi32> to vector<1x1536xi32>
    %36 = vector.shape_cast %33 : vector<1x1536xi32> to vector<1x1x1536xi32>
    tpu.vector_store %arg4[%c0_13, %c0_14, %c0_15], %36 {strides = array<i32>} : memref<1x1x1536xi32, #tpu.memory_space<vmem>>, vector<1x1x1536xi32>,
    return
  }
  func.func @transform_0(%arg0: i32, %arg1: i32) -> (i32, i32, i32) {
    %c0_i32 = arith.constant 0 : i32
    %c0_i32_0 = arith.constant 0 : i32
    %c0_i32_1 = arith.constant 0 : i32
    return %c0_i32, %c0_i32_0, %arg1 : i32, i32, i32
  }
  func.func @transform_1(%arg0: i32, %arg1: i32) -> (i32, i32, i32) {
    %c0_i32 = arith.constant 0 : i32
    %c0_i32_0 = arith.constant 0 : i32
    return %arg0, %c0_i32, %arg1 : i32, i32, i32
  }
  func.func @transform_2(%arg0: i32, %arg1: i32) -> (i32, i32, i32) {
    %c0_i32 = arith.constant 0 : i32
    %c0_i32_0 = arith.constant 0 : i32
    return %arg0, %c0_i32, %arg1 : i32, i32, i32
  }
  func.func @transform_3(%arg0: i32, %arg1: i32) -> (i32, i32, i32) {
    %c0_i32 = arith.constant 0 : i32
    %c0_i32_0 = arith.constant 0 : i32
    return %arg0, %c0_i32, %arg1 : i32, i32, i32
  }
}

module attributes {stable_mosaic.version = 11 : i64} {
  func.func @_combine_kernel(%arg0: i32, %arg1: i32, %arg2: i32, %arg3: memref<1x3x1536xf32, #tpu.memory_space<vmem>>, %arg4: memref<1x1x8x1536xf32, #tpu.memory_space<vmem>>, %arg5: memref<1x1x1x1536xf32, #tpu.memory_space<vmem>>) attributes {dimension_semantics = [#tpu.dimension_semantics<parallel>, #tpu.dimension_semantics<parallel>, #tpu.dimension_semantics<arbitrary>], iteration_bounds = array<i64: 2, 1, 3>, scalar_prefetch = 0 : i64, scratch_operands = 0 : i64, tpu.core_type = #tpu.core_type<tc>, window_params = [{transform_indices = @transform_0, window_bounds = array<i64: 1, 3, 1536>}, {transform_indices = @transform_1, window_bounds = array<i64: 1, 1, 8, 1536>}, {transform_indices = @transform_2, window_bounds = array<i64: 1, 1, 1, 1536>}]} {
    %c0 = arith.constant 0 : index
    %c0_0 = arith.constant 0 : index
    %c0_1 = arith.constant 0 : index
    %0 = vector.load %arg3[%c0, %c0_0, %c0_1] : memref<1x3x1536xf32, #tpu.memory_space<vmem>>, vector<1x3x1536xf32>
    %1 = vector.extract_strided_slice %0 {offsets = [0, 0, 0], sizes = [1, 1, 1536], strides = [1, 1, 1]} : vector<1x3x1536xf32> to vector<1x1x1536xf32>
    %2 = vector.shape_cast %1 : vector<1x1x1536xf32> to vector<1x1536xf32>
    %3 = math.floor %2 : vector<1x1536xf32>
    %4 = arith.subf %2, %3 : vector<1x1536xf32>
    %cst = arith.constant -2.000000e+00 : f32
    %cst_2 = arith.constant 1.600000e+01 : f32
    %5 = vector.broadcast %cst : f32 to vector<1x1536xf32>
    %6 = arith.maximumf %5, %3 : vector<1x1536xf32>
    %7 = vector.broadcast %cst_2 : f32 to vector<1x1536xf32>
    %8 = arith.minimumf %7, %6 : vector<1x1536xf32>
    %9 = arith.fptosi %8 : vector<1x1536xf32> to vector<1x1536xi32>
    %c0_i32 = arith.constant 0 : i32
    %c14_i32 = arith.constant 14 : i32
    %10 = vector.broadcast %c0_i32 : i32 to vector<1x1536xi32>
    %11 = arith.maxsi %10, %9 : vector<1x1536xi32>
    %12 = vector.broadcast %c14_i32 : i32 to vector<1x1536xi32>
    %13 = arith.minsi %12, %11 : vector<1x1536xi32>
    %14 = arith.cmpi eq, %13, %9 : vector<1x1536xi32>
    %c1_i32 = arith.constant 1 : i32
    %15 = vector.broadcast %c1_i32 : i32 to vector<1x1536xi32>
    %16 = arith.addi %9, %15 : vector<1x1536xi32>
    %17 = arith.cmpi eq, %13, %16 : vector<1x1536xi32>
    %c1_i32_3 = arith.constant 1 : i32
    %18 = vector.broadcast %c1_i32_3 : i32 to vector<1x1536xi32>
    %19 = arith.subi %9, %18 : vector<1x1536xi32>
    %20 = arith.cmpi eq, %13, %19 : vector<1x1536xi32>
    %cst_4 = arith.constant 1.000000e+00 : f32
    %21 = vector.broadcast %cst_4 : f32 to vector<1x1536xf32>
    %22 = arith.subf %21, %4 : vector<1x1536xf32>
    %cst_5 = arith.constant 0.000000e+00 : f32
    %23 = vector.broadcast %cst_5 : f32 to vector<1x1536xf32>
    %24 = arith.select %17, %4, %23 : vector<1x1536xi1>, vector<1x1536xf32>
    %25 = arith.select %14, %22, %24 : vector<1x1536xi1>, vector<1x1536xf32>
    %cst_6 = arith.constant 1.000000e+00 : f32
    %26 = vector.broadcast %cst_6 : f32 to vector<1x1536xf32>
    %27 = arith.subf %26, %4 : vector<1x1536xf32>
    %cst_7 = arith.constant 0.000000e+00 : f32
    %28 = vector.broadcast %cst_7 : f32 to vector<1x1536xf32>
    %29 = arith.select %20, %27, %28 : vector<1x1536xi1>, vector<1x1536xf32>
    %30 = arith.select %14, %4, %29 : vector<1x1536xi1>, vector<1x1536xf32>
    %31 = vector.extract_strided_slice %0 {offsets = [0, 1, 0], sizes = [1, 1, 1536], strides = [1, 1, 1]} : vector<1x3x1536xf32> to vector<1x1x1536xf32>
    %32 = vector.shape_cast %31 : vector<1x1x1536xf32> to vector<1x1536xf32>
    %33 = math.floor %32 : vector<1x1536xf32>
    %34 = arith.subf %32, %33 : vector<1x1536xf32>
    %cst_8 = arith.constant -2.000000e+00 : f32
    %cst_9 = arith.constant 1.200000e+01 : f32
    %35 = vector.broadcast %cst_8 : f32 to vector<1x1536xf32>
    %36 = arith.maximumf %35, %33 : vector<1x1536xf32>
    %37 = vector.broadcast %cst_9 : f32 to vector<1x1536xf32>
    %38 = arith.minimumf %37, %36 : vector<1x1536xf32>
    %39 = arith.fptosi %38 : vector<1x1536xf32> to vector<1x1536xi32>
    %c0_i32_10 = arith.constant 0 : i32
    %c10_i32 = arith.constant 10 : i32
    %40 = vector.broadcast %c0_i32_10 : i32 to vector<1x1536xi32>
    %41 = arith.maxsi %40, %39 : vector<1x1536xi32>
    %42 = vector.broadcast %c10_i32 : i32 to vector<1x1536xi32>
    %43 = arith.minsi %42, %41 : vector<1x1536xi32>
    %44 = arith.cmpi eq, %43, %39 : vector<1x1536xi32>
    %c1_i32_11 = arith.constant 1 : i32
    %45 = vector.broadcast %c1_i32_11 : i32 to vector<1x1536xi32>
    %46 = arith.addi %39, %45 : vector<1x1536xi32>
    %47 = arith.cmpi eq, %43, %46 : vector<1x1536xi32>
    %c1_i32_12 = arith.constant 1 : i32
    %48 = vector.broadcast %c1_i32_12 : i32 to vector<1x1536xi32>
    %49 = arith.subi %39, %48 : vector<1x1536xi32>
    %50 = arith.cmpi eq, %43, %49 : vector<1x1536xi32>
    %cst_13 = arith.constant 1.000000e+00 : f32
    %51 = vector.broadcast %cst_13 : f32 to vector<1x1536xf32>
    %52 = arith.subf %51, %34 : vector<1x1536xf32>
    %cst_14 = arith.constant 0.000000e+00 : f32
    %53 = vector.broadcast %cst_14 : f32 to vector<1x1536xf32>
    %54 = arith.select %47, %34, %53 : vector<1x1536xi1>, vector<1x1536xf32>
    %55 = arith.select %44, %52, %54 : vector<1x1536xi1>, vector<1x1536xf32>
    %cst_15 = arith.constant 1.000000e+00 : f32
    %56 = vector.broadcast %cst_15 : f32 to vector<1x1536xf32>
    %57 = arith.subf %56, %34 : vector<1x1536xf32>
    %cst_16 = arith.constant 0.000000e+00 : f32
    %58 = vector.broadcast %cst_16 : f32 to vector<1x1536xf32>
    %59 = arith.select %50, %57, %58 : vector<1x1536xi1>, vector<1x1536xf32>
    %60 = arith.select %44, %34, %59 : vector<1x1536xi1>, vector<1x1536xf32>
    %61 = vector.extract_strided_slice %0 {offsets = [0, 2, 0], sizes = [1, 1, 1536], strides = [1, 1, 1]} : vector<1x3x1536xf32> to vector<1x1x1536xf32>
    %62 = vector.shape_cast %61 : vector<1x1x1536xf32> to vector<1x1536xf32>
    %63 = math.floor %62 : vector<1x1536xf32>
    %64 = arith.subf %62, %63 : vector<1x1536xf32>
    %cst_17 = arith.constant -2.000000e+00 : f32
    %cst_18 = arith.constant 8.000000e+00 : f32
    %65 = vector.broadcast %cst_17 : f32 to vector<1x1536xf32>
    %66 = arith.maximumf %65, %63 : vector<1x1536xf32>
    %67 = vector.broadcast %cst_18 : f32 to vector<1x1536xf32>
    %68 = arith.minimumf %67, %66 : vector<1x1536xf32>
    %69 = arith.fptosi %68 : vector<1x1536xf32> to vector<1x1536xi32>
    %c0_i32_19 = arith.constant 0 : i32
    %c6_i32 = arith.constant 6 : i32
    %70 = vector.broadcast %c0_i32_19 : i32 to vector<1x1536xi32>
    %71 = arith.maxsi %70, %69 : vector<1x1536xi32>
    %72 = vector.broadcast %c6_i32 : i32 to vector<1x1536xi32>
    %73 = arith.minsi %72, %71 : vector<1x1536xi32>
    %74 = arith.cmpi eq, %73, %69 : vector<1x1536xi32>
    %c1_i32_20 = arith.constant 1 : i32
    %75 = vector.broadcast %c1_i32_20 : i32 to vector<1x1536xi32>
    %76 = arith.addi %69, %75 : vector<1x1536xi32>
    %77 = arith.cmpi eq, %73, %76 : vector<1x1536xi32>
    %c1_i32_21 = arith.constant 1 : i32
    %78 = vector.broadcast %c1_i32_21 : i32 to vector<1x1536xi32>
    %79 = arith.subi %69, %78 : vector<1x1536xi32>
    %80 = arith.cmpi eq, %73, %79 : vector<1x1536xi32>
    %cst_22 = arith.constant 1.000000e+00 : f32
    %81 = vector.broadcast %cst_22 : f32 to vector<1x1536xf32>
    %82 = arith.subf %81, %64 : vector<1x1536xf32>
    %cst_23 = arith.constant 0.000000e+00 : f32
    %83 = vector.broadcast %cst_23 : f32 to vector<1x1536xf32>
    %84 = arith.select %77, %64, %83 : vector<1x1536xi1>, vector<1x1536xf32>
    %85 = arith.select %74, %82, %84 : vector<1x1536xi1>, vector<1x1536xf32>
    %cst_24 = arith.constant 1.000000e+00 : f32
    %86 = vector.broadcast %cst_24 : f32 to vector<1x1536xf32>
    %87 = arith.subf %86, %64 : vector<1x1536xf32>
    %cst_25 = arith.constant 0.000000e+00 : f32
    %88 = vector.broadcast %cst_25 : f32 to vector<1x1536xf32>
    %89 = arith.select %80, %87, %88 : vector<1x1536xi1>, vector<1x1536xf32>
    %90 = arith.select %74, %64, %89 : vector<1x1536xi1>, vector<1x1536xf32>
    %91 = arith.mulf %85, %55 : vector<1x1536xf32>
    %92 = arith.mulf %85, %60 : vector<1x1536xf32>
    %93 = arith.mulf %90, %55 : vector<1x1536xf32>
    %94 = arith.mulf %90, %60 : vector<1x1536xf32>
    %cst_26 = arith.constant 0.000000e+00 : f32
    %95 = vector.broadcast %cst_26 : f32 to vector<1x1536xf32>
    %96 = arith.mulf %91, %25 : vector<1x1536xf32>
    %c0_27 = arith.constant 0 : index
    %c0_28 = arith.constant 0 : index
    %c0_29 = arith.constant 0 : index
    %c0_30 = arith.constant 0 : index
    %97 = vector.load %arg4[%c0_27, %c0_28, %c0_29, %c0_30] : memref<1x1x8x1536xf32, #tpu.memory_space<vmem>>, vector<1x1x1x1536xf32>
    %98 = vector.shape_cast %97 : vector<1x1x1x1536xf32> to vector<1x1536xf32>
    %99 = arith.mulf %96, %98 : vector<1x1536xf32>
    %100 = arith.addf %95, %99 : vector<1x1536xf32>
    %101 = arith.mulf %91, %30 : vector<1x1536xf32>
    %c0_31 = arith.constant 0 : index
    %c0_32 = arith.constant 0 : index
    %c1 = arith.constant 1 : index
    %c0_33 = arith.constant 0 : index
    %102 = vector.load %arg4[%c0_31, %c0_32, %c1, %c0_33] : memref<1x1x8x1536xf32, #tpu.memory_space<vmem>>, vector<1x1x1x1536xf32>
    %103 = vector.shape_cast %102 : vector<1x1x1x1536xf32> to vector<1x1536xf32>
    %104 = arith.mulf %101, %103 : vector<1x1536xf32>
    %105 = arith.addf %100, %104 : vector<1x1536xf32>
    %106 = arith.mulf %92, %25 : vector<1x1536xf32>
    %c0_34 = arith.constant 0 : index
    %c0_35 = arith.constant 0 : index
    %c2 = arith.constant 2 : index
    %c0_36 = arith.constant 0 : index
    %107 = vector.load %arg4[%c0_34, %c0_35, %c2, %c0_36] : memref<1x1x8x1536xf32, #tpu.memory_space<vmem>>, vector<1x1x1x1536xf32>
    %108 = vector.shape_cast %107 : vector<1x1x1x1536xf32> to vector<1x1536xf32>
    %109 = arith.mulf %106, %108 : vector<1x1536xf32>
    %110 = arith.addf %105, %109 : vector<1x1536xf32>
    %111 = arith.mulf %92, %30 : vector<1x1536xf32>
    %c0_37 = arith.constant 0 : index
    %c0_38 = arith.constant 0 : index
    %c3 = arith.constant 3 : index
    %c0_39 = arith.constant 0 : index
    %112 = vector.load %arg4[%c0_37, %c0_38, %c3, %c0_39] : memref<1x1x8x1536xf32, #tpu.memory_space<vmem>>, vector<1x1x1x1536xf32>
    %113 = vector.shape_cast %112 : vector<1x1x1x1536xf32> to vector<1x1536xf32>
    %114 = arith.mulf %111, %113 : vector<1x1536xf32>
    %115 = arith.addf %110, %114 : vector<1x1536xf32>
    %116 = arith.mulf %93, %25 : vector<1x1536xf32>
    %c0_40 = arith.constant 0 : index
    %c0_41 = arith.constant 0 : index
    %c4 = arith.constant 4 : index
    %c0_42 = arith.constant 0 : index
    %117 = vector.load %arg4[%c0_40, %c0_41, %c4, %c0_42] : memref<1x1x8x1536xf32, #tpu.memory_space<vmem>>, vector<1x1x1x1536xf32>
    %118 = vector.shape_cast %117 : vector<1x1x1x1536xf32> to vector<1x1536xf32>
    %119 = arith.mulf %116, %118 : vector<1x1536xf32>
    %120 = arith.addf %115, %119 : vector<1x1536xf32>
    %121 = arith.mulf %93, %30 : vector<1x1536xf32>
    %c0_43 = arith.constant 0 : index
    %c0_44 = arith.constant 0 : index
    %c5 = arith.constant 5 : index
    %c0_45 = arith.constant 0 : index
    %122 = vector.load %arg4[%c0_43, %c0_44, %c5, %c0_45] : memref<1x1x8x1536xf32, #tpu.memory_space<vmem>>, vector<1x1x1x1536xf32>
    %123 = vector.shape_cast %122 : vector<1x1x1x1536xf32> to vector<1x1536xf32>
    %124 = arith.mulf %121, %123 : vector<1x1536xf32>
    %125 = arith.addf %120, %124 : vector<1x1536xf32>
    %126 = arith.mulf %94, %25 : vector<1x1536xf32>
    %c0_46 = arith.constant 0 : index
    %c0_47 = arith.constant 0 : index
    %c6 = arith.constant 6 : index
    %c0_48 = arith.constant 0 : index
    %127 = vector.load %arg4[%c0_46, %c0_47, %c6, %c0_48] : memref<1x1x8x1536xf32, #tpu.memory_space<vmem>>, vector<1x1x1x1536xf32>
    %128 = vector.shape_cast %127 : vector<1x1x1x1536xf32> to vector<1x1536xf32>
    %129 = arith.mulf %126, %128 : vector<1x1536xf32>
    %130 = arith.addf %125, %129 : vector<1x1536xf32>
    %131 = arith.mulf %94, %30 : vector<1x1536xf32>
    %c0_49 = arith.constant 0 : index
    %c0_50 = arith.constant 0 : index
    %c7 = arith.constant 7 : index
    %c0_51 = arith.constant 0 : index
    %132 = vector.load %arg4[%c0_49, %c0_50, %c7, %c0_51] : memref<1x1x8x1536xf32, #tpu.memory_space<vmem>>, vector<1x1x1x1536xf32>
    %133 = vector.shape_cast %132 : vector<1x1x1x1536xf32> to vector<1x1536xf32>
    %134 = arith.mulf %131, %133 : vector<1x1536xf32>
    %135 = arith.addf %130, %134 : vector<1x1536xf32>
    %c0_52 = arith.constant 0 : index
    %c0_53 = arith.constant 0 : index
    %c0_54 = arith.constant 0 : index
    %c0_55 = arith.constant 0 : index
    %136 = vector.load %arg5[%c0_52, %c0_53, %c0_54, %c0_55] : memref<1x1x1x1536xf32, #tpu.memory_space<vmem>>, vector<1x1x1x1536xf32>
    %137 = vector.shape_cast %136 : vector<1x1x1x1536xf32> to vector<1x1536xf32>
    %138 = vector.shape_cast %135 : vector<1x1536xf32> to vector<1x1x1x1536xf32>
    tpu.vector_store %arg5[%c0_52, %c0_53, %c0_54, %c0_55], %138 {strides = array<i32>} : memref<1x1x1x1536xf32, #tpu.memory_space<vmem>>, vector<1x1x1x1536xf32>,
    return
  }
  func.func @transform_0(%arg0: i32, %arg1: i32, %arg2: i32) -> (i32, i32, i32) {
    %c0_i32 = arith.constant 0 : i32
    %c0_i32_0 = arith.constant 0 : i32
    return %arg0, %c0_i32, %arg1 : i32, i32, i32
  }
  func.func @transform_1(%arg0: i32, %arg1: i32, %arg2: i32) -> (i32, i32, i32, i32) {
    %c0_i32 = arith.constant 0 : i32
    %c0_i32_0 = arith.constant 0 : i32
    return %arg0, %arg2, %c0_i32, %arg1 : i32, i32, i32, i32
  }
  func.func @transform_2(%arg0: i32, %arg1: i32, %arg2: i32) -> (i32, i32, i32, i32) {
    %c0_i32 = arith.constant 0 : i32
    %c0_i32_0 = arith.constant 0 : i32
    return %arg0, %arg2, %c0_i32, %arg1 : i32, i32, i32, i32
  }
}

</mosaic_0001>

<llo_original>
// kernel: spatial_transformer_forward.2
$region0: #{spatial_transformer_forward.2}
  #allocation0 [shape = 'u32[]', space=smem, size = 0x4, offset = 0x4, fixed_abs, tag = 'smem constant byte address 0x4 - core index']
  #allocation1 [shape = 'u32[72,128]{1,0:T(1,128)}', space=vmem, size = 0x9000, scoped, tag = 'internal scratch']
  %s0 = inlined_call_operand.vmem [shape: f32[1,3,1536], index: 0, kind: input, shape index: {}]
  %s1 = inlined_call_operand.vmem [shape: f32[2,3,1536], index: 1, kind: input, shape index: {}]
  %s2 = inlined_call_operand.vmem [shape: s32[2,1,1536], index: 2, kind: output, shape index: {0}]
  %s3 = inlined_call_operand.vmem [shape: f32[2,3,1536], index: 3, kind: output, shape index: {1}]
  %4 = xla_tuple %s2, %s3
  %s5 = sld [smem:[#allocation0]]
  $region49: #{spatial_transformer_forward.2} parent=0
    _
  %s7 = ssub.s32 1, %s5
  %s8 = scalar_select 0, %s7, %s5
  loop: start=0, step=1, limit=4
  $region2: #{spatial_transformer_forward.2} parent=0 // loop_pre_header
    _
  $region3: #{spatial_transformer_forward.2} parent=0 // loop_header
    %s10 = sphi 0, %s14
    %p11 = scmp.ge.s32.totalorder %s10, 4
    %s17 = sphi 0, %s29
    %s18 = sphi 0, %s25
    %s19 = sphi 0, %s17
    %s20 = sphi 0, %s18
    %s21 = sphi 0, %s19
    %s22 = sphi 0, %s20
    %s32 = sphi 0, %s34
    %s35 = sphi 0, %s32
    %s36 = sphi 0, %s35
    %s52 = sphi 0, %s36
    %s60 = sphi 0, %s62
    %s63 = sphi 0, %s60
    %s64 = sphi 0, %s63
    %s80 = sphi 0, %s64
    %s88 = sphi 0, %s90
    %s91 = sphi 0, %s88
    %s92 = sphi 0, %s91
    %s108 = sphi 0, %s92
    %s116 = sphi 0, %s118
    %s119 = sphi 0, %s116
    %s120 = sphi 0, %s119
    %s136 = sphi 0, %s120
  $region4: #{spatial_transformer_forward.2} parent=0 // loop_header_branch
    %13 = sbr.rel (%p11) target = $region8
  $region5: #{spatial_transformer_forward.2} parent=0 // loop_body
    %s15 = ssub.s32 %s10, 1
    %s16 = ssub.s32 %s10, 2
    %s23 = sadd.s32 1, %s18
    %p24 = scmp.ge.s32.totalorder %s23, 1
    %s25 = scalar_select %p24, 0, %s23
    %s26 = sadd.s32 1, %s17
    %s27 = scalar_select %p24, %s26, %s17
    %p28 = scmp.ge.s32.totalorder %s27, 2
    %s29 = scalar_select %p28, 0, %s27
    %s30 = ssub.s32 %s18, %s25
    %p31 = scmp.eq.s32.totalorder %s30, 0
    %s33 = sadd.s32 %s32, 1
    %s34 = scalar_select %p31, %s32, %s33
    %p37 = pneg %p31
    %p38 = scmp.eq.s32.totalorder %s10, 1
    %p39 = por %p37, %p38
    %p40 = scmp.ne.s32.totalorder %s32, %s35
    %p41 = scmp.eq.s32.totalorder %s10, 0
    %p42 = por %p40, %p41
    %p43 = scmp.ne.s32.totalorder %s32, %s35
    %p44 = scmp.eq.s32.totalorder %s15, 1
    %p45 = por %p43, %p44
    %p46 = scmp.ne.s32.totalorder %s35, %s36
    %p47 = scmp.eq.s32.totalorder %s15, 0
    %p48 = por %p46, %p47
    %p49 = scmp.ne.s32.totalorder %s35, %s36
    %p50 = scmp.eq.s32.totalorder %s16, 1
    %p51 = por %p49, %p50
    %p53 = scmp.ne.s32.totalorder %s36, %s52
    %p54 = scmp.eq.s32.totalorder %s16, 0
    %p55 = por %p53, %p54
    %s56 = ssub.s32 %s17, %s29
    %s57 = ssub.s32 %s18, %s25
    %s58 = sor.u32 %s56, %s57
    %p59 = scmp.eq.s32.totalorder %s58, 0
    %s61 = sadd.s32 %s60, 1
    %s62 = scalar_select %p59, %s60, %s61
    %p65 = pneg %p59
    %p66 = scmp.eq.s32.totalorder %s10, 1
    %p67 = por %p65, %p66
    %p68 = scmp.ne.s32.totalorder %s60, %s63
    %p69 = scmp.eq.s32.totalorder %s10, 0
    %p70 = por %p68, %p69
    %p71 = scmp.ne.s32.totalorder %s60, %s63
    %p72 = scmp.eq.s32.totalorder %s15, 1
    %p73 = por %p71, %p72
    %p74 = scmp.ne.s32.totalorder %s63, %s64
    %p75 = scmp.eq.s32.totalorder %s15, 0
    %p76 = por %p74, %p75
    %p77 = scmp.ne.s32.totalorder %s63, %s64
    %p78 = scmp.eq.s32.totalorder %s16, 1
    %p79 = por %p77, %p78
    %p81 = scmp.ne.s32.totalorder %s64, %s80
    %p82 = scmp.eq.s32.totalorder %s16, 0
    %p83 = por %p81, %p82
    %s84 = ssub.s32 %s17, %s29
    %s85 = ssub.s32 %s18, %s25
    %s86 = sor.u32 %s84, %s85
    %p87 = scmp.eq.s32.totalorder %s86, 0
    %s89 = sadd.s32 %s88, 1
    %s90 = scalar_select %p87, %s88, %s89
    %p93 = pneg %p87
    %p94 = scmp.eq.s32.totalorder %s10, 1
    %p95 = por %p93, %p94
    %p96 = scmp.ne.s32.totalorder %s88, %s91
    %p97 = scmp.eq.s32.totalorder %s10, 0
    %p98 = por %p96, %p97
    %p99 = scmp.ne.s32.totalorder %s88, %s91
    %p100 = scmp.eq.s32.totalorder %s15, 1
    %p101 = por %p99, %p100
    %p102 = scmp.ne.s32.totalorder %s91, %s92
    %p103 = scmp.eq.s32.totalorder %s15, 0
    %p104 = por %p102, %p103
    %p105 = scmp.ne.s32.totalorder %s91, %s92
    %p106 = scmp.eq.s32.totalorder %s16, 1
    %p107 = por %p105, %p106
    %p109 = scmp.ne.s32.totalorder %s92, %s108
    %p110 = scmp.eq.s32.totalorder %s16, 0
    %p111 = por %p109, %p110
    %s112 = ssub.s32 %s17, %s29
    %s113 = ssub.s32 %s18, %s25
    %s114 = sor.u32 %s112, %s113
    %p115 = scmp.eq.s32.totalorder %s114, 0
    %s117 = sadd.s32 %s116, 1
    %s118 = scalar_select %p115, %s116, %s117
    %p121 = pneg %p115
    %p122 = scmp.eq.s32.totalorder %s10, 1
    %p123 = por %p121, %p122
    %p124 = scmp.ne.s32.totalorder %s116, %s119
    %p125 = scmp.eq.s32.totalorder %s10, 0
    %p126 = por %p124, %p125
    %p127 = scmp.ne.s32.totalorder %s116, %s119
    %p128 = scmp.eq.s32.totalorder %s15, 1
    %p129 = por %p127, %p128
    %p130 = scmp.ne.s32.totalorder %s119, %s120
    %p131 = scmp.eq.s32.totalorder %s15, 0
    %p132 = por %p130, %p131
    %p133 = scmp.ne.s32.totalorder %s119, %s120
    %p134 = scmp.eq.s32.totalorder %s16, 1
    %p135 = por %p133, %p134
    %p137 = scmp.ne.s32.totalorder %s120, %s136
    %p138 = scmp.eq.s32.totalorder %s16, 0
    %p139 = por %p137, %p138
    %p140 = scmp.le.s32.totalorder 1, %s10
    %p141 = scmp.lt.s32.totalorder %s10, 3
    %p142 = pnand %p140, %p141
    %p143 = pneg %p142
    // Predicated region
    $region9: #{spatial_transformer_forward.2} parent=5 // pred_check
      _
    $region10: #{spatial_transformer_forward.2} parent=5 // pred_check_branch
      %145 = sbr.rel (%p142) target = $region12
    $region11: #{spatial_transformer_forward.2} parent=5 // pred_region
      %s146 = ssub.s32 %s10, 1
      // Predicated region
      $region13: #{spatial_transformer_forward.2} parent=11 // pred_check
        %p147 = pneg %p48
      $region14: #{spatial_transformer_forward.2} parent=11 // pred_check_branch
        %149 = sbr.rel (%p147) target = $region16
      $region15: #{spatial_transformer_forward.2} parent=11 // pred_region
        %s150 = smul.u32 12, %s20
        %p151 = scmp.lt.s32.totalorder %s150, 11
        %s152 = scalar_select %p151, %s150, 11
        %s153 = smul.addr %s152, 4
        %s154 = scalar_lea.vmem %s0, %s153
        %s155 = smul.u32 12, %s20
      $region16: #{spatial_transformer_forward.2} parent=11 // pred_fallthru
        _
    $region12: #{spatial_transformer_forward.2} parent=5 // pred_fallthru
      _
    %p156 = scmp.lt.s32.totalorder %s10, 2
    // Predicated region
    $region17: #{spatial_transformer_forward.2} parent=5 // pred_check
      %p157 = pneg %p156
    $region18: #{spatial_transformer_forward.2} parent=5 // pred_check_branch
      %159 = sbr.rel (%p157) target = $region20
    $region19: #{spatial_transformer_forward.2} parent=5 // pred_region
      // Predicated region
      $region21: #{spatial_transformer_forward.2} parent=19 // pred_check
        %p160 = pneg %p70
      $region22: #{spatial_transformer_forward.2} parent=19 // pred_check_branch
        %162 = sbr.rel (%p160) target = $region24
      $region23: #{spatial_transformer_forward.2} parent=19 // pred_region
        %s163 = smul.u32 12, %s18
        %p164 = scmp.lt.s32.totalorder %s17, 1
        %s165 = scalar_select %p164, %s17, 1
        %p166 = scmp.lt.s32.totalorder %s163, 11
        %s167 = scalar_select %p166, %s163, 11
        %s168 = smul.addr %s165, 12
        %s169 = sadd.s32 %s167, %s168
        %s170 = smul.addr %s169, 4
        %s171 = scalar_lea.vmem %s1, %s170
        %s172 = smul.u32 12, %s18
      $region24: #{spatial_transformer_forward.2} parent=19 // pred_fallthru
        _
    $region20: #{spatial_transformer_forward.2} parent=5 // pred_fallthru
      _
    %p173 = scmp.le.s32.totalorder 1, %s10
    %p174 = scmp.lt.s32.totalorder %s10, 3
    %p175 = pnand %p173, %p174
    %p176 = pneg %p175
    // Predicated region
    $region25: #{spatial_transformer_forward.2} parent=5 // pred_check
      _
    $region26: #{spatial_transformer_forward.2} parent=5 // pred_check_branch
      %178 = sbr.rel (%p175) target = $region28
    $region27: #{spatial_transformer_forward.2} parent=5 // pred_region
      %s179 = ssub.s32 %s10, 1
      %s180 = smul.u32 12, %s20
      %p181 = scmp.lt.s32.totalorder %s180, 11
      %s182 = scalar_select %p181, %s180, 11
      %s183 = smul.addr %s182, 4
      %s184 = scalar_lea.vmem %s0, %s183
      %p185 = pneg %p48
      %p186 = pneg %p45
      %s187 = smul.u32 12, %s20
      %p188 = scmp.lt.s32.totalorder %s19, 1
      %s189 = scalar_select %p188, %s19, 1
      %p190 = scmp.lt.s32.totalorder %s187, 11
      %s191 = scalar_select %p190, %s187, 11
      %s192 = smul.addr %s189, 12
      %s193 = sadd.s32 %s191, %s192
      %s194 = smul.addr %s193, 4
      %s195 = scalar_lea.vmem %s1, %s194
      %p196 = pneg %p76
      %p197 = pneg %p73
      %p198 = pneg %p104
      %p199 = pneg %p101
      %s200 = smul.u32 12, %s20
      %p201 = scmp.lt.s32.totalorder %s19, 1
      %s202 = scalar_select %p201, %s19, 1
      %p203 = scmp.lt.s32.totalorder %s200, 11
      %s204 = scalar_select %p203, %s200, 11
      %s205 = smul.addr %s202, 12
      %s206 = sadd.s32 %s204, %s205
      %s207 = scalar_lea.vmem %s2, %s206
      %p208 = pneg %p132
      %p209 = pneg %p129
      %s210 = smul.u32 12, %s20
      %p211 = scmp.lt.s32.totalorder %s19, 1
      %s212 = scalar_select %p211, %s19, 1
      %p213 = scmp.lt.s32.totalorder %s210, 11
      %s214 = scalar_select %p213, %s210, 11
      %s215 = smul.addr %s212, 12
      %s216 = sadd.s32 %s214, %s215
      %s217 = smul.addr %s216, 4
      %s218 = scalar_lea.vmem %s3, %s217
      %s219 = smul.u32 12, %s20
      %p220 = scmp.lt.s32.totalorder %s219, 11
      %s221 = scalar_select %p220, %s219, 11
      %s222 = smul.addr %s221, 4
      %s223 = scalar_lea.vmem %s0, %s222
      %s224 = smul.u32 12, %s20
      %s225 = smul.u32 12, %s20
      %p226 = scmp.lt.s32.totalorder %s19, 1
      %s227 = scalar_select %p226, %s19, 1
      %p228 = scmp.lt.s32.totalorder %s225, 11
      %s229 = scalar_select %p228, %s225, 11
      %s230 = smul.addr %s227, 12
      %s231 = sadd.s32 %s229, %s230
      %s232 = smul.addr %s231, 4
      %s233 = scalar_lea.vmem %s1, %s232
      %s234 = smul.u32 12, %s20
      %s235 = smul.u32 12, %s20
      %p236 = scmp.lt.s32.totalorder %s19, 1
      %s237 = scalar_select %p236, %s19, 1
      %p238 = scmp.lt.s32.totalorder %s235, 11
      %s239 = scalar_select %p238, %s235, 11
      %s240 = smul.addr %s237, 12
      %s241 = sadd.s32 %s239, %s240
      %s242 = scalar_lea.vmem %s2, %s241
      %s243 = smul.u32 12, %s20
      %s244 = smul.u32 12, %s20
      %p245 = scmp.lt.s32.totalorder %s19, 1
      %s246 = scalar_select %p245, %s19, 1
      %p247 = scmp.lt.s32.totalorder %s244, 11
      %s248 = scalar_select %p247, %s244, 11
      %s249 = smul.addr %s246, 12
      %s250 = sadd.s32 %s248, %s249
      %s251 = smul.addr %s250, 4
      %s252 = scalar_lea.vmem %s3, %s251
      %s253 = smul.u32 12, %s20
      %v254 = vld [vmem:[%s223] sm:$0x77]
      %v255 = vld [vmem:[%s223 + $0x8] sm:$0x77]
      %v256 = vld [vmem:[%s223 + $0x10] sm:$0x77]
      %v257 = vld [vmem:[%s223 + $0x18] sm:$0x77]
      %v258 = vld [vmem:[%s223 + $0x20] sm:$0x77]
      %v259 = vld [vmem:[%s223 + $0x28] sm:$0x77]
      %v260 = vld [vmem:[%s233] sm:$0x77]
      %v261 = vld [vmem:[%s233 + $0x8] sm:$0x77]
      %v262 = vld [vmem:[%s233 + $0x10] sm:$0x77]
      %v263 = vld [vmem:[%s233 + $0x18] sm:$0x77]
      %v264 = vld [vmem:[%s233 + $0x20] sm:$0x77]
      %v265 = vld [vmem:[%s233 + $0x28] sm:$0x77]
      %v266 = vadd.f32 %v254, %v260
      %v267 = vadd.f32 %v255, %v261
      %v268 = vadd.f32 %v256, %v262
      %v269 = vadd.f32 %v257, %v263
      %v270 = vadd.f32 %v258, %v264
      %v271 = vadd.f32 %v259, %v265
      %272 = vst [vmem:[%s252] sm:$0x77] %v266
      %273 = vst [vmem:[%s252 + $0x8] sm:$0x77] %v267
      %274 = vst [vmem:[%s252 + $0x10] sm:$0x77] %v268
      %275 = vst [vmem:[%s252 + $0x18] sm:$0x77] %v269
      %276 = vst [vmem:[%s252 + $0x20] sm:$0x77] %v270
      %277 = vst [vmem:[%s252 + $0x28] sm:$0x77] %v271
      %v278 = vfloor.f32 %v266
      %v279 = vfloor.f32 %v267
      %v280 = vfloor.f32 %v268
      %v281 = vfloor.f32 %v269
      %v282 = vfloor.f32 %v270
      %v283 = vfloor.f32 %v271
      %v284 = vmax.f32 %v278, 0.0
      %v285 = vmax.f32 %v279, 0.0
      %v286 = vmax.f32 %v280, 0.0
      %v287 = vmax.f32 %v281, 0.0
      %v288 = vmax.f32 %v282, 0.0
      %v289 = vmax.f32 %v283, 0.0
      %v290 = vmin.f32 %v284, 14.0
      %v291 = vmin.f32 %v285, 14.0
      %v292 = vmin.f32 %v286, 14.0
      %v293 = vmin.f32 %v287, 14.0
      %v294 = vmin.f32 %v288, 14.0
      %v295 = vmin.f32 %v289, 14.0
      %v296 = vcvt.f32.s32.to.zero.pseudo %v290
      %v297 = vcvt.f32.s32.to.zero.pseudo %v291
      %v298 = vcvt.f32.s32.to.zero.pseudo %v292
      %v299 = vcvt.f32.s32.to.zero.pseudo %v293
      %v300 = vcvt.f32.s32.to.zero.pseudo %v294
      %v301 = vcvt.f32.s32.to.zero.pseudo %v295
      %v302 = vmin.f32 %v284, 10.0
      %v303 = vmin.f32 %v285, 10.0
      %v304 = vmin.f32 %v286, 10.0
      %v305 = vmin.f32 %v287, 10.0
      %v306 = vmin.f32 %v288, 10.0
      %v307 = vmin.f32 %v289, 10.0
      %v308 = vcvt.f32.s32.to.zero.pseudo %v302
      %v309 = vcvt.f32.s32.to.zero.pseudo %v303
      %v310 = vcvt.f32.s32.to.zero.pseudo %v304
      %v311 = vcvt.f32.s32.to.zero.pseudo %v305
      %v312 = vcvt.f32.s32.to.zero.pseudo %v306
      %v313 = vcvt.f32.s32.to.zero.pseudo %v307
      %v314 = vmin.f32 %v284, 6.0
      %v315 = vmin.f32 %v285, 6.0
      %v316 = vmin.f32 %v286, 6.0
      %v317 = vmin.f32 %v287, 6.0
      %v318 = vmin.f32 %v288, 6.0
      %v319 = vmin.f32 %v289, 6.0
      %v320 = vcvt.f32.s32.to.zero.pseudo %v314
      %v321 = vcvt.f32.s32.to.zero.pseudo %v315
      %v322 = vcvt.f32.s32.to.zero.pseudo %v316
      %v323 = vcvt.f32.s32.to.zero.pseudo %v317
      %v324 = vcvt.f32.s32.to.zero.pseudo %v318
      %v325 = vcvt.f32.s32.to.zero.pseudo %v319
      %v326 = vmul.u32 %v320, 12
      %v327 = vmul.u32 %v321, 12
      %v328 = vmul.u32 %v322, 12
      %v329 = vmul.u32 %v323, 12
      %v330 = vmul.u32 %v324, 12
      %v331 = vmul.u32 %v325, 12
      %v332 = vrot.slane %v308, 7
      %v333 = vrot.slane %v309, 7
      %v334 = vrot.slane %v310, 7
      %v335 = vrot.slane %v311, 7
      %v336 = vrot.slane %v312, 7
      %v337 = vrot.slane %v313, 7
      %v338 = vadd.s32 %v326, %v332
      %v339 = vadd.s32 %v327, %v333
      %v340 = vadd.s32 %v328, %v334
      %v341 = vadd.s32 %v329, %v335
      %v342 = vadd.s32 %v330, %v336
      %v343 = vadd.s32 %v331, %v337
      %v344 = vmul.u32 %v338, 16
      %v345 = vmul.u32 %v339, 16
      %v346 = vmul.u32 %v340, 16
      %v347 = vmul.u32 %v341, 16
      %v348 = vmul.u32 %v342, 16
      %v349 = vmul.u32 %v343, 16
      %v350 = vrot.slane %v296, 6
      %v351 = vrot.slane %v297, 6
      %v352 = vrot.slane %v298, 6
      %v353 = vrot.slane %v299, 6
      %v354 = vrot.slane %v300, 6
      %v355 = vrot.slane %v301, 6
      %v356 = vadd.s32 %v344, %v350
      %v357 = vadd.s32 %v345, %v351
      %v358 = vadd.s32 %v346, %v352
      %v359 = vadd.s32 %v347, %v353
      %v360 = vadd.s32 %v348, %v354
      %v361 = vadd.s32 %v349, %v355
      %362 = vst [vmem:[#allocation1] sm:$0xff] %v356
      %363 = vst [vmem:[#allocation1 + $0x8] sm:$0xff] %v357
      %364 = vst [vmem:[#allocation1 + $0x10] sm:$0xff] %v358
      %365 = vst [vmem:[#allocation1 + $0x18] sm:$0xff] %v359
      %366 = vst [vmem:[#allocation1 + $0x20] sm:$0xff] %v360
      %367 = vst [vmem:[#allocation1 + $0x28] sm:$0xff] %v361
      %s368 = scalar_lea.vmem [#allocation1], 2
      %v369 = vld [vmem:[%s368] ss:$4 sm:$0xff]
      %s370 = scalar_lea.vmem [#allocation1], 34
      %v371 = vld [vmem:[%s370] ss:$4 sm:$0xff]
      %372 = vst [vmem:[%s242] sm:$0xff] %v369
      %v373 = vlaneseq
      %vm374 = vcmp.ge.s32.totalorder %v373, 0
      %vm375 = vcmp.lt.s32.totalorder %v373, 512
      %vm376 = vmand %vm374, %vm375
      %377 = vst.msk [vmem:[%s242 + $0x8] sm:$0xf] %vm376, %v371
      %s378 = smul.u32 12, %s20
      %p379 = scmp.lt.s32.totalorder %s19, 1
      %s380 = scalar_select %p379, %s19, 1
      %p381 = scmp.lt.s32.totalorder %s378, 11
      %s382 = scalar_select %p381, %s378, 11
      %s383 = smul.addr %s380, 12
      %s384 = sadd.s32 %s382, %s383
      %s385 = scalar_lea.vmem %s2, %s384
      %s386 = smul.u32 12, %s20
      %p387 = scmp.lt.s32.totalorder %s19, 1
      %s388 = scalar_select %p387, %s19, 1
      %p389 = scmp.lt.s32.totalorder %s386, 11
      %s390 = scalar_select %p389, %s386, 11
      %s391 = smul.addr %s388, 12
      %s392 = sadd.s32 %s390, %s391
      %s393 = smul.addr %s392, 4
      %s394 = scalar_lea.vmem %s3, %s393
      // Predicated region
      $region29: #{spatial_transformer_forward.2} parent=27 // pred_check
        %p395 = pneg %p101
      $region30: #{spatial_transformer_forward.2} parent=27 // pred_check_branch
        %397 = sbr.rel (%p395) target = $region32
      $region31: #{spatial_transformer_forward.2} parent=27 // pred_region
        %s398 = smul.u32 12, %s20
      $region32: #{spatial_transformer_forward.2} parent=27 // pred_fallthru
        _
      // Predicated region
      $region33: #{spatial_transformer_forward.2} parent=27 // pred_check
        %p399 = pneg %p129
      $region34: #{spatial_transformer_forward.2} parent=27 // pred_check_branch
        %401 = sbr.rel (%p399) target = $region36
      $region35: #{spatial_transformer_forward.2} parent=27 // pred_region
        %s402 = smul.u32 12, %s20
      $region36: #{spatial_transformer_forward.2} parent=27 // pred_fallthru
        _
    $region28: #{spatial_transformer_forward.2} parent=5 // pred_fallthru
      _
    %p403 = scmp.le.s32.totalorder 2, %s10
    // Predicated region
    $region37: #{spatial_transformer_forward.2} parent=5 // pred_check
      %p404 = pneg %p403
    $region38: #{spatial_transformer_forward.2} parent=5 // pred_check_branch
      %406 = sbr.rel (%p404) target = $region40
    $region39: #{spatial_transformer_forward.2} parent=5 // pred_region
      %s407 = ssub.s32 %s10, 2
      // Predicated region
      $region41: #{spatial_transformer_forward.2} parent=39 // pred_check
        %p408 = pneg %p107
      $region42: #{spatial_transformer_forward.2} parent=39 // pred_check_branch
        %410 = sbr.rel (%p408) target = $region44
      $region43: #{spatial_transformer_forward.2} parent=39 // pred_region
        %s411 = smul.u32 12, %s22
        %p412 = scmp.lt.s32.totalorder %s21, 1
        %s413 = scalar_select %p412, %s21, 1
        %p414 = scmp.lt.s32.totalorder %s411, 11
        %s415 = scalar_select %p414, %s411, 11
        %s416 = smul.addr %s413, 12
        %s417 = sadd.s32 %s415, %s416
        %s418 = scalar_lea.vmem %s2, %s417
      $region44: #{spatial_transformer_forward.2} parent=39 // pred_fallthru
        _
      // Predicated region
      $region45: #{spatial_transformer_forward.2} parent=39 // pred_check
        %p419 = pneg %p135
      $region46: #{spatial_transformer_forward.2} parent=39 // pred_check_branch
        %421 = sbr.rel (%p419) target = $region48
      $region47: #{spatial_transformer_forward.2} parent=39 // pred_region
        %s422 = smul.u32 12, %s22
        %p423 = scmp.lt.s32.totalorder %s21, 1
        %s424 = scalar_select %p423, %s21, 1
        %p425 = scmp.lt.s32.totalorder %s422, 11
        %s426 = scalar_select %p425, %s422, 11
        %s427 = smul.addr %s424, 12
        %s428 = sadd.s32 %s426, %s427
        %s429 = smul.addr %s428, 4
        %s430 = scalar_lea.vmem %s3, %s429
      $region48: #{spatial_transformer_forward.2} parent=39 // pred_fallthru
        _
    $region40: #{spatial_transformer_forward.2} parent=5 // pred_fallthru
      _
  $region6: #{spatial_transformer_forward.2} parent=0 // loop_footer
    %s14 = sadd.s32 1, %s10
  $region7: #{spatial_transformer_forward.2} parent=0 // loop_footer_branch
    %9 = sbr.rel target = $region3
  $region8: #{spatial_transformer_forward.2} parent=0 // loop_exit
    _

// kernel: spatial_transformer_forward.3
$region0: #{spatial_transformer_forward.3}
  #allocation0 [shape = 'u32[]', space=smem, size = 0x4, offset = 0x4, fixed_abs, tag = 'smem constant byte address 0x4 - core index']
  #allocation1 [shape = 'u32[72,128]{1,0:T(1,128)}', space=vmem, size = 0x9000, scoped, tag = 'internal scratch']
  %s0 = inlined_call_operand.vmem [shape: f32[2,3,1536], index: 0, kind: input, shape index: {}]
  %s1 = inlined_call_operand.vmem [shape: f32[2,3,8,1536], index: 1, kind: input, shape index: {}]
  %s2 = inlined_call_operand.vmem [shape: f32[2,3,1,1536], index: 2, kind: output, shape index: {}]
  %s3 = sld [smem:[#allocation0]]
  $region41: #{spatial_transformer_forward.3} parent=0
    _
  %s5 = ssub.s32 1, %s3
  %s6 = scalar_select 0, %s5, %s3
  loop: start=0, step=1, limit=8
  $region2: #{spatial_transformer_forward.3} parent=0 // loop_pre_header
    _
  $region3: #{spatial_transformer_forward.3} parent=0 // loop_header
    %s8 = sphi 0, %s12
    %p9 = scmp.ge.s32.totalorder %s8, 8
    %s15 = sphi 0, %s34
    %s16 = sphi 0, %s30
    %s17 = sphi 0, %s26
    %s18 = sphi 0, %s15
    %s19 = sphi 0, %s16
    %s20 = sphi 0, %s17
    %s21 = sphi 0, %s18
    %s22 = sphi 0, %s19
    %s23 = sphi 0, %s20
    %s39 = sphi 0, %s41
    %s42 = sphi 0, %s39
    %s43 = sphi 0, %s42
    %s59 = sphi 0, %s43
    %s69 = sphi 0, %s71
    %s72 = sphi 0, %s69
    %s73 = sphi 0, %s72
    %s89 = sphi 0, %s73
    %s99 = sphi 0, %s101
    %s102 = sphi 0, %s99
    %s103 = sphi 0, %s102
    %s119 = sphi 0, %s103
  $region4: #{spatial_transformer_forward.3} parent=0 // loop_header_branch
    %11 = sbr.rel (%p9) target = $region8
  $region5: #{spatial_transformer_forward.3} parent=0 // loop_body
    %s13 = ssub.s32 %s8, 1
    %s14 = ssub.s32 %s8, 2
    %s24 = sadd.s32 1, %s17
    %p25 = scmp.ge.s32.totalorder %s24, 3
    %s26 = scalar_select %p25, 0, %s24
    %s27 = sadd.s32 1, %s16
    %s28 = scalar_select %p25, %s27, %s16
    %p29 = scmp.ge.s32.totalorder %s28, 1
    %s30 = scalar_select %p29, 0, %s28
    %s31 = sadd.s32 1, %s15
    %s32 = scalar_select %p29, %s31, %s15
    %p33 = scmp.ge.s32.totalorder %s32, 2
    %s34 = scalar_select %p33, 0, %s32
    %s35 = ssub.s32 %s15, %s34
    %s36 = ssub.s32 %s16, %s30
    %s37 = sor.u32 %s35, %s36
    %p38 = scmp.eq.s32.totalorder %s37, 0
    %s40 = sadd.s32 %s39, 1
    %s41 = scalar_select %p38, %s39, %s40
    %p44 = pneg %p38
    %p45 = scmp.eq.s32.totalorder %s8, 5
    %p46 = por %p44, %p45
    %p47 = scmp.ne.s32.totalorder %s39, %s42
    %p48 = scmp.eq.s32.totalorder %s8, 0
    %p49 = por %p47, %p48
    %p50 = scmp.ne.s32.totalorder %s39, %s42
    %p51 = scmp.eq.s32.totalorder %s13, 5
    %p52 = por %p50, %p51
    %p53 = scmp.ne.s32.totalorder %s42, %s43
    %p54 = scmp.eq.s32.totalorder %s13, 0
    %p55 = por %p53, %p54
    %p56 = scmp.ne.s32.totalorder %s42, %s43
    %p57 = scmp.eq.s32.totalorder %s14, 5
    %p58 = por %p56, %p57
    %p60 = scmp.ne.s32.totalorder %s43, %s59
    %p61 = scmp.eq.s32.totalorder %s14, 0
    %p62 = por %p60, %p61
    %s63 = ssub.s32 %s15, %s34
    %s64 = ssub.s32 %s17, %s26
    %s65 = sor.u32 %s63, %s64
    %s66 = ssub.s32 %s16, %s30
    %s67 = sor.u32 %s65, %s66
    %p68 = scmp.eq.s32.totalorder %s67, 0
    %s70 = sadd.s32 %s69, 1
    %s71 = scalar_select %p68, %s69, %s70
    %p74 = pneg %p68
    %p75 = scmp.eq.s32.totalorder %s8, 5
    %p76 = por %p74, %p75
    %p77 = scmp.ne.s32.totalorder %s69, %s72
    %p78 = scmp.eq.s32.totalorder %s8, 0
    %p79 = por %p77, %p78
    %p80 = scmp.ne.s32.totalorder %s69, %s72
    %p81 = scmp.eq.s32.totalorder %s13, 5
    %p82 = por %p80, %p81
    %p83 = scmp.ne.s32.totalorder %s72, %s73
    %p84 = scmp.eq.s32.totalorder %s13, 0
    %p85 = por %p83, %p84
    %p86 = scmp.ne.s32.totalorder %s72, %s73
    %p87 = scmp.eq.s32.totalorder %s14, 5
    %p88 = por %p86, %p87
    %p90 = scmp.ne.s32.totalorder %s73, %s89
    %p91 = scmp.eq.s32.totalorder %s14, 0
    %p92 = por %p90, %p91
    %s93 = ssub.s32 %s15, %s34
    %s94 = ssub.s32 %s17, %s26
    %s95 = sor.u32 %s93, %s94
    %s96 = ssub.s32 %s16, %s30
    %s97 = sor.u32 %s95, %s96
    %p98 = scmp.eq.s32.totalorder %s97, 0
    %s100 = sadd.s32 %s99, 1
    %s101 = scalar_select %p98, %s99, %s100
    %p104 = pneg %p98
    %p105 = scmp.eq.s32.totalorder %s8, 5
    %p106 = por %p104, %p105
    %p107 = scmp.ne.s32.totalorder %s99, %s102
    %p108 = scmp.eq.s32.totalorder %s8, 0
    %p109 = por %p107, %p108
    %p110 = scmp.ne.s32.totalorder %s99, %s102
    %p111 = scmp.eq.s32.totalorder %s13, 5
    %p112 = por %p110, %p111
    %p113 = scmp.ne.s32.totalorder %s102, %s103
    %p114 = scmp.eq.s32.totalorder %s13, 0
    %p115 = por %p113, %p114
    %p116 = scmp.ne.s32.totalorder %s102, %s103
    %p117 = scmp.eq.s32.totalorder %s14, 5
    %p118 = por %p116, %p117
    %p120 = scmp.ne.s32.totalorder %s103, %s119
    %p121 = scmp.eq.s32.totalorder %s14, 0
    %p122 = por %p120, %p121
    %p123 = scmp.le.s32.totalorder 1, %s8
    %p124 = scmp.lt.s32.totalorder %s8, 7
    %p125 = pnand %p123, %p124
    %p126 = pneg %p125
    // Predicated region
    $region9: #{spatial_transformer_forward.3} parent=5 // pred_check
      _
    $region10: #{spatial_transformer_forward.3} parent=5 // pred_check_branch
      %128 = sbr.rel (%p125) target = $region12
    $region11: #{spatial_transformer_forward.3} parent=5 // pred_region
      %s129 = ssub.s32 %s8, 1
    $region12: #{spatial_transformer_forward.3} parent=5 // pred_fallthru
      _
    %p130 = scmp.lt.s32.totalorder %s8, 6
    // Predicated region
    $region13: #{spatial_transformer_forward.3} parent=5 // pred_check
      %p131 = pneg %p130
    $region14: #{spatial_transformer_forward.3} parent=5 // pred_check_branch
      %133 = sbr.rel (%p131) target = $region16
    $region15: #{spatial_transformer_forward.3} parent=5 // pred_region
      // Predicated region
      $region17: #{spatial_transformer_forward.3} parent=15 // pred_check
        %p134 = pneg %p49
      $region18: #{spatial_transformer_forward.3} parent=15 // pred_check_branch
        %136 = sbr.rel (%p134) target = $region20
      $region19: #{spatial_transformer_forward.3} parent=15 // pred_region
        %s137 = smul.u32 12, %s16
        %p138 = scmp.lt.s32.totalorder %s15, 1
        %s139 = scalar_select %p138, %s15, 1
        %p140 = scmp.lt.s32.totalorder %s137, 11
        %s141 = scalar_select %p140, %s137, 11
        %s142 = smul.addr %s139, 12
        %s143 = sadd.s32 %s141, %s142
        %s144 = smul.addr %s143, 4
        %s145 = scalar_lea.vmem %s0, %s144
        %s146 = smul.u32 12, %s16
      $region20: #{spatial_transformer_forward.3} parent=15 // pred_fallthru
        _
      // Predicated region
      $region21: #{spatial_transformer_forward.3} parent=15 // pred_check
        %p147 = pneg %p79
      $region22: #{spatial_transformer_forward.3} parent=15 // pred_check_branch
        %149 = sbr.rel (%p147) target = $region24
      $region23: #{spatial_transformer_forward.3} parent=15 // pred_region
        %s150 = smul.u32 12, %s16
        %p151 = scmp.lt.s32.totalorder %s15, 1
        %s152 = scalar_select %p151, %s15, 1
        %p153 = scmp.lt.s32.totalorder %s17, 2
        %s154 = scalar_select %p153, %s17, 2
        %p155 = scmp.lt.s32.totalorder %s150, 11
        %s156 = scalar_select %p155, %s150, 11
        %s157 = smul.addr %s154, 12
        %s158 = sadd.s32 %s156, %s157
        %s159 = smul.addr %s152, 36
        %s160 = sadd.s32 %s158, %s159
        %s161 = smul.addr %s160, 8
        %s162 = scalar_lea.vmem %s1, %s161
        %s163 = smul.u32 12, %s16
      $region24: #{spatial_transformer_forward.3} parent=15 // pred_fallthru
        _
    $region16: #{spatial_transformer_forward.3} parent=5 // pred_fallthru
      _
    %p164 = scmp.le.s32.totalorder 1, %s8
    %p165 = scmp.lt.s32.totalorder %s8, 7
    %p166 = pnand %p164, %p165
    %p167 = pneg %p166
    // Predicated region
    $region25: #{spatial_transformer_forward.3} parent=5 // pred_check
      _
    $region26: #{spatial_transformer_forward.3} parent=5 // pred_check_branch
      %169 = sbr.rel (%p166) target = $region28
    $region27: #{spatial_transformer_forward.3} parent=5 // pred_region
      %s170 = ssub.s32 %s8, 1
      %s171 = smul.u32 12, %s19
      %p172 = scmp.lt.s32.totalorder %s18, 1
      %s173 = scalar_select %p172, %s18, 1
      %p174 = scmp.lt.s32.totalorder %s171, 11
      %s175 = scalar_select %p174, %s171, 11
      %s176 = smul.addr %s173, 12
      %s177 = sadd.s32 %s175, %s176
      %s178 = smul.addr %s177, 4
      %s179 = scalar_lea.vmem %s0, %s178
      %p180 = pneg %p55
      %p181 = pneg %p52
      %s182 = smul.u32 12, %s19
      %p183 = scmp.lt.s32.totalorder %s18, 1
      %s184 = scalar_select %p183, %s18, 1
      %p185 = scmp.lt.s32.totalorder %s20, 2
      %s186 = scalar_select %p185, %s20, 2
      %p187 = scmp.lt.s32.totalorder %s182, 11
      %s188 = scalar_select %p187, %s182, 11
      %s189 = smul.addr %s186, 12
      %s190 = sadd.s32 %s188, %s189
      %s191 = smul.addr %s184, 36
      %s192 = sadd.s32 %s190, %s191
      %s193 = smul.addr %s192, 8
      %s194 = scalar_lea.vmem %s1, %s193
      %p195 = pneg %p85
      %p196 = pneg %p82
      %p197 = pneg %p115
      %p198 = pneg %p112
      %s199 = smul.u32 12, %s19
      %p200 = scmp.lt.s32.totalorder %s18, 1
      %s201 = scalar_select %p200, %s18, 1
      %p202 = scmp.lt.s32.totalorder %s20, 2
      %s203 = scalar_select %p202, %s20, 2
      %p204 = scmp.lt.s32.totalorder %s199, 11
      %s205 = scalar_select %p204, %s199, 11
      %s206 = smul.addr %s203, 12
      %s207 = sadd.s32 %s205, %s206
      %s208 = smul.addr %s201, 36
      %s209 = sadd.s32 %s207, %s208
      %s210 = scalar_lea.vmem %s2, %s209
      %s211 = smul.u32 12, %s19
      %p212 = scmp.lt.s32.totalorder %s18, 1
      %s213 = scalar_select %p212, %s18, 1
      %p214 = scmp.lt.s32.totalorder %s211, 11
      %s215 = scalar_select %p214, %s211, 11
      %s216 = smul.addr %s213, 12
      %s217 = sadd.s32 %s215, %s216
      %s218 = smul.addr %s217, 4
      %s219 = scalar_lea.vmem %s0, %s218
      %s220 = smul.u32 12, %s19
      %s221 = smul.u32 12, %s19
      %p222 = scmp.lt.s32.totalorder %s18, 1
      %s223 = scalar_select %p222, %s18, 1
      %p224 = scmp.lt.s32.totalorder %s20, 2
      %s225 = scalar_select %p224, %s20, 2
      %p226 = scmp.lt.s32.totalorder %s221, 11
      %s227 = scalar_select %p226, %s221, 11
      %s228 = smul.addr %s225, 12
      %s229 = sadd.s32 %s227, %s228
      %s230 = smul.addr %s223, 36
      %s231 = sadd.s32 %s229, %s230
      %s232 = smul.addr %s231, 8
      %s233 = scalar_lea.vmem %s1, %s232
      %s234 = smul.u32 12, %s19
      %s235 = smul.u32 12, %s19
      %p236 = scmp.lt.s32.totalorder %s18, 1
      %s237 = scalar_select %p236, %s18, 1
      %p238 = scmp.lt.s32.totalorder %s20, 2
      %s239 = scalar_select %p238, %s20, 2
      %p240 = scmp.lt.s32.totalorder %s235, 11
      %s241 = scalar_select %p240, %s235, 11
      %s242 = smul.addr %s239, 12
      %s243 = sadd.s32 %s241, %s242
      %s244 = smul.addr %s237, 36
      %s245 = sadd.s32 %s243, %s244
      %s246 = scalar_lea.vmem %s2, %s245
      %s247 = smul.u32 12, %s19
      %v248 = vld [vmem:[%s219] sm:$0x77]
      %v249 = vld [vmem:[%s219 + $0x8] sm:$0x77]
      %v250 = vld [vmem:[%s219 + $0x10] sm:$0x77]
      %v251 = vld [vmem:[%s219 + $0x18] sm:$0x77]
      %v252 = vld [vmem:[%s219 + $0x20] sm:$0x77]
      %v253 = vld [vmem:[%s219 + $0x28] sm:$0x77]
      %v254 = vfloor.f32 %v248
      %v255 = vfloor.f32 %v249
      %v256 = vfloor.f32 %v250
      %v257 = vfloor.f32 %v251
      %v258 = vfloor.f32 %v252
      %v259 = vfloor.f32 %v253
      %v260 = vsub.f32 %v248, %v254
      %v261 = vsub.f32 %v249, %v255
      %v262 = vsub.f32 %v250, %v256
      %v263 = vsub.f32 %v251, %v257
      %v264 = vsub.f32 %v252, %v258
      %v265 = vsub.f32 %v253, %v259
      %v266 = vmax.f32 %v254, -2.0
      %v267 = vmax.f32 %v255, -2.0
      %v268 = vmax.f32 %v256, -2.0
      %v269 = vmax.f32 %v257, -2.0
      %v270 = vmax.f32 %v258, -2.0
      %v271 = vmax.f32 %v259, -2.0
      %v272 = vmin.f32 %v266, 16.0
      %v273 = vmin.f32 %v267, 16.0
      %v274 = vmin.f32 %v268, 16.0
      %v275 = vmin.f32 %v269, 16.0
      %v276 = vmin.f32 %v270, 16.0
      %v277 = vmin.f32 %v271, 16.0
      %v278 = vcvt.f32.s32.to.zero.pseudo %v272
      %v279 = vcvt.f32.s32.to.zero.pseudo %v273
      %v280 = vcvt.f32.s32.to.zero.pseudo %v274
      %v281 = vcvt.f32.s32.to.zero.pseudo %v275
      %v282 = vcvt.f32.s32.to.zero.pseudo %v276
      %v283 = vcvt.f32.s32.to.zero.pseudo %v277
      %vm284 = vcmp.gt.s32.totalorder %v278, 0
      %v285 = vsel %vm284, %v278, 0
      %vm286 = vcmp.gt.s32.totalorder %v279, 0
      %v287 = vsel %vm286, %v279, 0
      %vm288 = vcmp.gt.s32.totalorder %v280, 0
      %v289 = vsel %vm288, %v280, 0
      %vm290 = vcmp.gt.s32.totalorder %v281, 0
      %v291 = vsel %vm290, %v281, 0
      %vm292 = vcmp.gt.s32.totalorder %v282, 0
      %v293 = vsel %vm292, %v282, 0
      %vm294 = vcmp.gt.s32.totalorder %v283, 0
      %v295 = vsel %vm294, %v283, 0
      %vm296 = vcmp.lt.s32.totalorder %v285, 14
      %v297 = vsel %vm296, %v285, 14
      %vm298 = vcmp.lt.s32.totalorder %v287, 14
      %v299 = vsel %vm298, %v287, 14
      %vm300 = vcmp.lt.s32.totalorder %v289, 14
      %v301 = vsel %vm300, %v289, 14
      %vm302 = vcmp.lt.s32.totalorder %v291, 14
      %v303 = vsel %vm302, %v291, 14
      %vm304 = vcmp.lt.s32.totalorder %v293, 14
      %v305 = vsel %vm304, %v293, 14
      %vm306 = vcmp.lt.s32.totalorder %v295, 14
      %v307 = vsel %vm306, %v295, 14
      %vm308 = vcmp.eq.s32.totalorder %v297, %v278
      %vm309 = vcmp.eq.s32.totalorder %v299, %v279
      %vm310 = vcmp.eq.s32.totalorder %v301, %v280
      %vm311 = vcmp.eq.s32.totalorder %v303, %v281
      %vm312 = vcmp.eq.s32.totalorder %v305, %v282
      %vm313 = vcmp.eq.s32.totalorder %v307, %v283
      %v314 = vadd.s32 %v278, 1
      %v315 = vadd.s32 %v279, 1
      %v316 = vadd.s32 %v280, 1
      %v317 = vadd.s32 %v281, 1
      %v318 = vadd.s32 %v282, 1
      %v319 = vadd.s32 %v283, 1
      %vm320 = vcmp.eq.s32.totalorder %v297, %v314
      %vm321 = vcmp.eq.s32.totalorder %v299, %v315
      %vm322 = vcmp.eq.s32.totalorder %v301, %v316
      %vm323 = vcmp.eq.s32.totalorder %v303, %v317
      %vm324 = vcmp.eq.s32.totalorder %v305, %v318
      %vm325 = vcmp.eq.s32.totalorder %v307, %v319
      %v326 = vsub.s32 %v278, 1
      %v327 = vsub.s32 %v279, 1
      %v328 = vsub.s32 %v280, 1
      %v329 = vsub.s32 %v281, 1
      %v330 = vsub.s32 %v282, 1
      %v331 = vsub.s32 %v283, 1
      %vm332 = vcmp.eq.s32.totalorder %v297, %v326
      %vm333 = vcmp.eq.s32.totalorder %v299, %v327
      %vm334 = vcmp.eq.s32.totalorder %v301, %v328
      %vm335 = vcmp.eq.s32.totalorder %v303, %v329
      %vm336 = vcmp.eq.s32.totalorder %v305, %v330
      %vm337 = vcmp.eq.s32.totalorder %v307, %v331
      %v338 = vsub.f32 1.0, %v260
      %v339 = vsub.f32 1.0, %v261
      %v340 = vsub.f32 1.0, %v262
      %v341 = vsub.f32 1.0, %v263
      %v342 = vsub.f32 1.0, %v264
      %v343 = vsub.f32 1.0, %v265
      %v344 = vsel %vm320, %v260, 0.0
      %v345 = vsel %vm321, %v261, 0.0
      %v346 = vsel %vm322, %v262, 0.0
      %v347 = vsel %vm323, %v263, 0.0
      %v348 = vsel %vm324, %v264, 0.0
      %v349 = vsel %vm325, %v265, 0.0
      %v350 = vsel %vm308, %v338, %v344
      %v351 = vsel %vm309, %v339, %v345
      %v352 = vsel %vm310, %v340, %v346
      %v353 = vsel %vm311, %v341, %v347
      %v354 = vsel %vm312, %v342, %v348
      %v355 = vsel %vm313, %v343, %v349
      %v356 = vsel %vm332, %v338, 0.0
      %v357 = vsel %vm333, %v339, 0.0
      %v358 = vsel %vm334, %v340, 0.0
      %v359 = vsel %vm335, %v341, 0.0
      %v360 = vsel %vm336, %v342, 0.0
      %v361 = vsel %vm337, %v343, 0.0
      %v362 = vsel %vm308, %v260, %v356
      %v363 = vsel %vm309, %v261, %v357
      %v364 = vsel %vm310, %v262, %v358
      %v365 = vsel %vm311, %v263, %v359
      %v366 = vsel %vm312, %v264, %v360
      %v367 = vsel %vm313, %v265, %v361
      %v368 = vmin.f32 %v266, 12.0
      %v369 = vmin.f32 %v267, 12.0
      %v370 = vmin.f32 %v268, 12.0
      %v371 = vmin.f32 %v269, 12.0
      %v372 = vmin.f32 %v270, 12.0
      %v373 = vmin.f32 %v271, 12.0
      %v374 = vcvt.f32.s32.to.zero.pseudo %v368
      %v375 = vcvt.f32.s32.to.zero.pseudo %v369
      %v376 = vcvt.f32.s32.to.zero.pseudo %v370
      %v377 = vcvt.f32.s32.to.zero.pseudo %v371
      %v378 = vcvt.f32.s32.to.zero.pseudo %v372
      %v379 = vcvt.f32.s32.to.zero.pseudo %v373
      %vm380 = vcmp.gt.s32.totalorder %v374, 0
      %v381 = vsel %vm380, %v374, 0
      %vm382 = vcmp.gt.s32.totalorder %v375, 0
      %v383 = vsel %vm382, %v375, 0
      %vm384 = vcmp.gt.s32.totalorder %v376, 0
      %v385 = vsel %vm384, %v376, 0
      %vm386 = vcmp.gt.s32.totalorder %v377, 0
      %v387 = vsel %vm386, %v377, 0
      %vm388 = vcmp.gt.s32.totalorder %v378, 0
      %v389 = vsel %vm388, %v378, 0
      %vm390 = vcmp.gt.s32.totalorder %v379, 0
      %v391 = vsel %vm390, %v379, 0
      %vm392 = vcmp.lt.s32.totalorder %v381, 10
      %v393 = vsel %vm392, %v381, 10
      %vm394 = vcmp.lt.s32.totalorder %v383, 10
      %v395 = vsel %vm394, %v383, 10
      %vm396 = vcmp.lt.s32.totalorder %v385, 10
      %v397 = vsel %vm396, %v385, 10
      %vm398 = vcmp.lt.s32.totalorder %v387, 10
      %v399 = vsel %vm398, %v387, 10
      %vm400 = vcmp.lt.s32.totalorder %v389, 10
      %v401 = vsel %vm400, %v389, 10
      %vm402 = vcmp.lt.s32.totalorder %v391, 10
      %v403 = vsel %vm402, %v391, 10
      %vm404 = vcmp.eq.s32.totalorder %v393, %v374
      %vm405 = vcmp.eq.s32.totalorder %v395, %v375
      %vm406 = vcmp.eq.s32.totalorder %v397, %v376
      %vm407 = vcmp.eq.s32.totalorder %v399, %v377
      %vm408 = vcmp.eq.s32.totalorder %v401, %v378
      %vm409 = vcmp.eq.s32.totalorder %v403, %v379
      %v410 = vadd.s32 %v374, 1
      %v411 = vadd.s32 %v375, 1
      %v412 = vadd.s32 %v376, 1
      %v413 = vadd.s32 %v377, 1
      %v414 = vadd.s32 %v378, 1
      %v415 = vadd.s32 %v379, 1
      %vm416 = vcmp.eq.s32.totalorder %v393, %v410
      %vm417 = vcmp.eq.s32.totalorder %v395, %v411
      %vm418 = vcmp.eq.s32.totalorder %v397, %v412
      %vm419 = vcmp.eq.s32.totalorder %v399, %v413
      %vm420 = vcmp.eq.s32.totalorder %v401, %v414
      %vm421 = vcmp.eq.s32.totalorder %v403, %v415
      %v422 = vsub.s32 %v374, 1
      %v423 = vsub.s32 %v375, 1
      %v424 = vsub.s32 %v376, 1
      %v425 = vsub.s32 %v377, 1
      %v426 = vsub.s32 %v378, 1
      %v427 = vsub.s32 %v379, 1
      %vm428 = vcmp.eq.s32.totalorder %v393, %v422
      %vm429 = vcmp.eq.s32.totalorder %v395, %v423
      %vm430 = vcmp.eq.s32.totalorder %v397, %v424
      %vm431 = vcmp.eq.s32.totalorder %v399, %v425
      %vm432 = vcmp.eq.s32.totalorder %v401, %v426
      %vm433 = vcmp.eq.s32.totalorder %v403, %v427
      %v434 = vsel %vm416, %v260, 0.0
      %v435 = vsel %vm417, %v261, 0.0
      %v436 = vsel %vm418, %v262, 0.0
      %v437 = vsel %vm419, %v263, 0.0
      %v438 = vsel %vm420, %v264, 0.0
      %v439 = vsel %vm421, %v265, 0.0
      %v440 = vsel %vm404, %v338, %v434
      %v441 = vsel %vm405, %v339, %v435
      %v442 = vsel %vm406, %v340, %v436
      %v443 = vsel %vm407, %v341, %v437
      %v444 = vsel %vm408, %v342, %v438
      %v445 = vsel %vm409, %v343, %v439
      %v446 = vsel %vm428, %v338, 0.0
      %v447 = vsel %vm429, %v339, 0.0
      %v448 = vsel %vm430, %v340, 0.0
      %v449 = vsel %vm431, %v341, 0.0
      %v450 = vsel %vm432, %v342, 0.0
      %v451 = vsel %vm433, %v343, 0.0
      %v452 = vsel %vm404, %v260, %v446
      %v453 = vsel %vm405, %v261, %v447
      %v454 = vsel %vm406, %v262, %v448
      %v455 = vsel %vm407, %v263, %v449
      %v456 = vsel %vm408, %v264, %v450
      %v457 = vsel %vm409, %v265, %v451
      %v458 = vmin.f32 %v266, 8.0
      %v459 = vmin.f32 %v267, 8.0
      %v460 = vmin.f32 %v268, 8.0
      %v461 = vmin.f32 %v269, 8.0
      %v462 = vmin.f32 %v270, 8.0
      %v463 = vmin.f32 %v271, 8.0
      %v464 = vcvt.f32.s32.to.zero.pseudo %v458
      %v465 = vcvt.f32.s32.to.zero.pseudo %v459
      %v466 = vcvt.f32.s32.to.zero.pseudo %v460
      %v467 = vcvt.f32.s32.to.zero.pseudo %v461
      %v468 = vcvt.f32.s32.to.zero.pseudo %v462
      %v469 = vcvt.f32.s32.to.zero.pseudo %v463
      %vm470 = vcmp.gt.s32.totalorder %v464, 0
      %v471 = vsel %vm470, %v464, 0
      %vm472 = vcmp.gt.s32.totalorder %v465, 0
      %v473 = vsel %vm472, %v465, 0
      %vm474 = vcmp.gt.s32.totalorder %v466, 0
      %v475 = vsel %vm474, %v466, 0
      %vm476 = vcmp.gt.s32.totalorder %v467, 0
      %v477 = vsel %vm476, %v467, 0
      %vm478 = vcmp.gt.s32.totalorder %v468, 0
      %v479 = vsel %vm478, %v468, 0
      %vm480 = vcmp.gt.s32.totalorder %v469, 0
      %v481 = vsel %vm480, %v469, 0
      %vm482 = vcmp.lt.s32.totalorder %v471, 6
      %v483 = vsel %vm482, %v471, 6
      %vm484 = vcmp.lt.s32.totalorder %v473, 6
      %v485 = vsel %vm484, %v473, 6
      %vm486 = vcmp.lt.s32.totalorder %v475, 6
      %v487 = vsel %vm486, %v475, 6
      %vm488 = vcmp.lt.s32.totalorder %v477, 6
      %v489 = vsel %vm488, %v477, 6
      %vm490 = vcmp.lt.s32.totalorder %v479, 6
      %v491 = vsel %vm490, %v479, 6
      %vm492 = vcmp.lt.s32.totalorder %v481, 6
      %v493 = vsel %vm492, %v481, 6
      %vm494 = vcmp.eq.s32.totalorder %v483, %v464
      %vm495 = vcmp.eq.s32.totalorder %v485, %v465
      %vm496 = vcmp.eq.s32.totalorder %v487, %v466
      %vm497 = vcmp.eq.s32.totalorder %v489, %v467
      %vm498 = vcmp.eq.s32.totalorder %v491, %v468
      %vm499 = vcmp.eq.s32.totalorder %v493, %v469
      %v500 = vadd.s32 %v464, 1
      %v501 = vadd.s32 %v465, 1
      %v502 = vadd.s32 %v466, 1
      %v503 = vadd.s32 %v467, 1
      %v504 = vadd.s32 %v468, 1
      %v505 = vadd.s32 %v469, 1
      %vm506 = vcmp.eq.s32.totalorder %v483, %v500
      %vm507 = vcmp.eq.s32.totalorder %v485, %v501
      %vm508 = vcmp.eq.s32.totalorder %v487, %v502
      %vm509 = vcmp.eq.s32.totalorder %v489, %v503
      %vm510 = vcmp.eq.s32.totalorder %v491, %v504
      %vm511 = vcmp.eq.s32.totalorder %v493, %v505
      %v512 = vsub.s32 %v464, 1
      %v513 = vsub.s32 %v465, 1
      %v514 = vsub.s32 %v466, 1
      %v515 = vsub.s32 %v467, 1
      %v516 = vsub.s32 %v468, 1
      %v517 = vsub.s32 %v469, 1
      %vm518 = vcmp.eq.s32.totalorder %v483, %v512
      %vm519 = vcmp.eq.s32.totalorder %v485, %v513
      %vm520 = vcmp.eq.s32.totalorder %v487, %v514
      %vm521 = vcmp.eq.s32.totalorder %v489, %v515
      %vm522 = vcmp.eq.s32.totalorder %v491, %v516
      %vm523 = vcmp.eq.s32.totalorder %v493, %v517
      %v524 = vsel %vm506, %v260, 0.0
      %v525 = vsel %vm507, %v261, 0.0
      %v526 = vsel %vm508, %v262, 0.0
      %v527 = vsel %vm509, %v263, 0.0
      %v528 = vsel %vm510, %v264, 0.0
      %v529 = vsel %vm511, %v265, 0.0
      %v530 = vsel %vm494, %v338, %v524
      %v531 = vsel %vm495, %v339, %v525
      %v532 = vsel %vm496, %v340, %v526
      %v533 = vsel %vm497, %v341, %v527
      %v534 = vsel %vm498, %v342, %v528
      %v535 = vsel %vm499, %v343, %v529
      %v536 = vsel %vm518, %v338, 0.0
      %v537 = vsel %vm519, %v339, 0.0
      %v538 = vsel %vm520, %v340, 0.0
      %v539 = vsel %vm521, %v341, 0.0
      %v540 = vsel %vm522, %v342, 0.0
      %v541 = vsel %vm523, %v343, 0.0
      %v542 = vsel %vm494, %v260, %v536
      %v543 = vsel %vm495, %v261, %v537
      %v544 = vsel %vm496, %v262, %v538
      %v545 = vsel %vm497, %v263, %v539
      %v546 = vsel %vm498, %v264, %v540
      %v547 = vsel %vm499, %v265, %v541
      %v554 = vrot.slane %v440, 7
      %v555 = vrot.slane %v441, 7
      %v556 = vrot.slane %v442, 7
      %v557 = vrot.slane %v443, 7
      %v558 = vrot.slane %v444, 7
      %v559 = vrot.slane %v445, 7
      %v566 = vmul.f32 %v530, %v554
      %v567 = vmul.f32 %v531, %v555
      %v568 = vmul.f32 %v532, %v556
      %v569 = vmul.f32 %v533, %v557
      %v570 = vmul.f32 %v534, %v558
      %v571 = vmul.f32 %v535, %v559
      %v578 = vrot.slane %v452, 7
      %v579 = vrot.slane %v453, 7
      %v580 = vrot.slane %v454, 7
      %v581 = vrot.slane %v455, 7
      %v582 = vrot.slane %v456, 7
      %v583 = vrot.slane %v457, 7
      %v590 = vmul.f32 %v530, %v578
      %v591 = vmul.f32 %v531, %v579
      %v592 = vmul.f32 %v532, %v580
      %v593 = vmul.f32 %v533, %v581
      %v594 = vmul.f32 %v534, %v582
      %v595 = vmul.f32 %v535, %v583
      %v596 = vmul.f32 %v542, %v554
      %v597 = vmul.f32 %v543, %v555
      %v598 = vmul.f32 %v544, %v556
      %v599 = vmul.f32 %v545, %v557
      %v600 = vmul.f32 %v546, %v558
      %v601 = vmul.f32 %v547, %v559
      %v602 = vmul.f32 %v542, %v578
      %v603 = vmul.f32 %v543, %v579
      %v604 = vmul.f32 %v544, %v580
      %v605 = vmul.f32 %v545, %v581
      %v606 = vmul.f32 %v546, %v582
      %v607 = vmul.f32 %v547, %v583
      %v614 = vrot.slane %v350, 6
      %v615 = vrot.slane %v351, 6
      %v616 = vrot.slane %v352, 6
      %v617 = vrot.slane %v353, 6
      %v618 = vrot.slane %v354, 6
      %v619 = vrot.slane %v355, 6
      %v626 = vmul.f32 %v566, %v614
      %v627 = vmul.f32 %v567, %v615
      %v628 = vmul.f32 %v568, %v616
      %v629 = vmul.f32 %v569, %v617
      %v630 = vmul.f32 %v570, %v618
      %v631 = vmul.f32 %v571, %v619
      %v632 = vld [vmem:[%s233] ss:$8 sm:$0xf]
      %v633 = vld [vmem:[%s233] ss:$8 sm:$0xf0]
      %v634 = vor.u32 %v632, %v633
      %s635 = scalar_lea.vmem %s233, 64
      %v636 = vld [vmem:[%s635] ss:$8 sm:$0xf]
      %v640 = vunpack.c.l.s4 286326784
      %v641 = vunpack.c.0.s8 %v640
      %v642 = vperm.slane %v634, %v641
      %v644 = vunpack.c.l.s4 858989090
      %v645 = vunpack.c.0.s8 %v644
      %v646 = vperm.slane %v634, %v645
      %v648 = vunpack.c.l.s4 1431651396
      %v649 = vunpack.c.0.s8 %v648
      %v650 = vperm.slane %v634, %v649
      %v652 = vunpack.c.l.s4 2004313702
      %v653 = vunpack.c.0.s8 %v652
      %v654 = vperm.slane %v634, %v653
      %v656 = vunpack.c.l.s4 286326784
      %v657 = vunpack.c.0.s8 %v656
      %v658 = vperm.slane %v636, %v657
      %v660 = vunpack.c.l.s4 858989090
      %v661 = vunpack.c.0.s8 %v660
      %v662 = vperm.slane %v636, %v661
      %v669 = vmul.f32 %v626, %v642
      %v670 = vmul.f32 %v627, %v646
      %v671 = vmul.f32 %v628, %v650
      %v672 = vmul.f32 %v629, %v654
      %v673 = vmul.f32 %v630, %v658
      %v674 = vmul.f32 %v631, %v662
      %v675 = vadd.f32 %v669, 0.0
      %v676 = vadd.f32 %v670, 0.0
      %v677 = vadd.f32 %v671, 0.0
      %v678 = vadd.f32 %v672, 0.0
      %v679 = vadd.f32 %v673, 0.0
      %v680 = vadd.f32 %v674, 0.0
      %v687 = vrot.slane %v362, 6
      %v688 = vrot.slane %v363, 6
      %v689 = vrot.slane %v364, 6
      %v690 = vrot.slane %v365, 6
      %v691 = vrot.slane %v366, 6
      %v692 = vrot.slane %v367, 6
      %v699 = vmul.f32 %v566, %v687
      %v700 = vmul.f32 %v567, %v688
      %v701 = vmul.f32 %v568, %v689
      %v702 = vmul.f32 %v569, %v690
      %v703 = vmul.f32 %v570, %v691
      %v704 = vmul.f32 %v571, %v692
      %s705 = scalar_lea.vmem %s233, 1
      %v706 = vld [vmem:[%s705] ss:$8 sm:$0xf]
      %v707 = vld [vmem:[%s705] ss:$8 sm:$0xf0]
      %v708 = vor.u32 %v706, %v707
      %s709 = scalar_lea.vmem %s233, 65
      %v710 = vld [vmem:[%s709] ss:$8 sm:$0xf]
      %v714 = vunpack.c.l.s4 286326784
      %v715 = vunpack.c.0.s8 %v714
      %v716 = vperm.slane %v708, %v715
      %v718 = vunpack.c.l.s4 858989090
      %v719 = vunpack.c.0.s8 %v718
      %v720 = vperm.slane %v708, %v719
      %v722 = vunpack.c.l.s4 1431651396
      %v723 = vunpack.c.0.s8 %v722
      %v724 = vperm.slane %v708, %v723
      %v726 = vunpack.c.l.s4 2004313702
      %v727 = vunpack.c.0.s8 %v726
      %v728 = vperm.slane %v708, %v727
      %v730 = vunpack.c.l.s4 286326784
      %v731 = vunpack.c.0.s8 %v730
      %v732 = vperm.slane %v710, %v731
      %v734 = vunpack.c.l.s4 858989090
      %v735 = vunpack.c.0.s8 %v734
      %v736 = vperm.slane %v710, %v735
      %v743 = vmul.f32 %v699, %v716
      %v744 = vmul.f32 %v700, %v720
      %v745 = vmul.f32 %v701, %v724
      %v746 = vmul.f32 %v702, %v728
      %v747 = vmul.f32 %v703, %v732
      %v748 = vmul.f32 %v704, %v736
      %v749 = vadd.f32 %v675, %v743
      %v750 = vadd.f32 %v676, %v744
      %v751 = vadd.f32 %v677, %v745
      %v752 = vadd.f32 %v678, %v746
      %v753 = vadd.f32 %v679, %v747
      %v754 = vadd.f32 %v680, %v748
      %v755 = vmul.f32 %v590, %v614
      %v756 = vmul.f32 %v591, %v615
      %v757 = vmul.f32 %v592, %v616
      %v758 = vmul.f32 %v593, %v617
      %v759 = vmul.f32 %v594, %v618
      %v760 = vmul.f32 %v595, %v619
      %s761 = scalar_lea.vmem %s233, 2
      %v762 = vld [vmem:[%s761] ss:$8 sm:$0xf]
      %v763 = vld [vmem:[%s761] ss:$8 sm:$0xf0]
      %v764 = vor.u32 %v762, %v763
      %s765 = scalar_lea.vmem %s233, 66
      %v766 = vld [vmem:[%s765] ss:$8 sm:$0xf]
      %v770 = vunpack.c.l.s4 286326784
      %v771 = vunpack.c.0.s8 %v770
      %v772 = vperm.slane %v764, %v771
      %v774 = vunpack.c.l.s4 858989090
      %v775 = vunpack.c.0.s8 %v774
      %v776 = vperm.slane %v764, %v775
      %v778 = vunpack.c.l.s4 1431651396
      %v779 = vunpack.c.0.s8 %v778
      %v780 = vperm.slane %v764, %v779
      %v782 = vunpack.c.l.s4 2004313702
      %v783 = vunpack.c.0.s8 %v782
      %v784 = vperm.slane %v764, %v783
      %v786 = vunpack.c.l.s4 286326784
      %v787 = vunpack.c.0.s8 %v786
      %v788 = vperm.slane %v766, %v787
      %v790 = vunpack.c.l.s4 858989090
      %v791 = vunpack.c.0.s8 %v790
      %v792 = vperm.slane %v766, %v791
      %v799 = vmul.f32 %v755, %v772
      %v800 = vmul.f32 %v756, %v776
      %v801 = vmul.f32 %v757, %v780
      %v802 = vmul.f32 %v758, %v784
      %v803 = vmul.f32 %v759, %v788
      %v804 = vmul.f32 %v760, %v792
      %v805 = vadd.f32 %v749, %v799
      %v806 = vadd.f32 %v750, %v800
      %v807 = vadd.f32 %v751, %v801
      %v808 = vadd.f32 %v752, %v802
      %v809 = vadd.f32 %v753, %v803
      %v810 = vadd.f32 %v754, %v804
      %v811 = vmul.f32 %v590, %v687
      %v812 = vmul.f32 %v591, %v688
      %v813 = vmul.f32 %v592, %v689
      %v814 = vmul.f32 %v593, %v690
      %v815 = vmul.f32 %v594, %v691
      %v816 = vmul.f32 %v595, %v692
      %s817 = scalar_lea.vmem %s233, 3
      %v818 = vld [vmem:[%s817] ss:$8 sm:$0xf]
      %v819 = vld [vmem:[%s817] ss:$8 sm:$0xf0]
      %v820 = vor.u32 %v818, %v819
      %s821 = scalar_lea.vmem %s233, 67
      %v822 = vld [vmem:[%s821] ss:$8 sm:$0xf]
      %v826 = vunpack.c.l.s4 286326784
      %v827 = vunpack.c.0.s8 %v826
      %v828 = vperm.slane %v820, %v827
      %v830 = vunpack.c.l.s4 858989090
      %v831 = vunpack.c.0.s8 %v830
      %v832 = vperm.slane %v820, %v831
      %v834 = vunpack.c.l.s4 1431651396
      %v835 = vunpack.c.0.s8 %v834
      %v836 = vperm.slane %v820, %v835
      %v838 = vunpack.c.l.s4 2004313702
      %v839 = vunpack.c.0.s8 %v838
      %v840 = vperm.slane %v820, %v839
      %v842 = vunpack.c.l.s4 286326784
      %v843 = vunpack.c.0.s8 %v842
      %v844 = vperm.slane %v822, %v843
      %v846 = vunpack.c.l.s4 858989090
      %v847 = vunpack.c.0.s8 %v846
      %v848 = vperm.slane %v822, %v847
      %v855 = vmul.f32 %v811, %v828
      %v856 = vmul.f32 %v812, %v832
      %v857 = vmul.f32 %v813, %v836
      %v858 = vmul.f32 %v814, %v840
      %v859 = vmul.f32 %v815, %v844
      %v860 = vmul.f32 %v816, %v848
      %v861 = vadd.f32 %v805, %v855
      %v862 = vadd.f32 %v806, %v856
      %v863 = vadd.f32 %v807, %v857
      %v864 = vadd.f32 %v808, %v858
      %v865 = vadd.f32 %v809, %v859
      %v866 = vadd.f32 %v810, %v860
      %v867 = vmul.f32 %v596, %v614
      %v868 = vmul.f32 %v597, %v615
      %v869 = vmul.f32 %v598, %v616
      %v870 = vmul.f32 %v599, %v617
      %v871 = vmul.f32 %v600, %v618
      %v872 = vmul.f32 %v601, %v619
      %s873 = scalar_lea.vmem %s233, 4
      %v874 = vld [vmem:[%s873] ss:$8 sm:$0xf]
      %v875 = vld [vmem:[%s873] ss:$8 sm:$0xf0]
      %v876 = vor.u32 %v874, %v875
      %s877 = scalar_lea.vmem %s233, 68
      %v878 = vld [vmem:[%s877] ss:$8 sm:$0xf]
      %v882 = vunpack.c.l.s4 286326784
      %v883 = vunpack.c.0.s8 %v882
      %v884 = vperm.slane %v876, %v883
      %v886 = vunpack.c.l.s4 858989090
      %v887 = vunpack.c.0.s8 %v886
      %v888 = vperm.slane %v876, %v887
      %v890 = vunpack.c.l.s4 1431651396
      %v891 = vunpack.c.0.s8 %v890
      %v892 = vperm.slane %v876, %v891
      %v894 = vunpack.c.l.s4 2004313702
      %v895 = vunpack.c.0.s8 %v894
      %v896 = vperm.slane %v876, %v895
      %v898 = vunpack.c.l.s4 286326784
      %v899 = vunpack.c.0.s8 %v898
      %v900 = vperm.slane %v878, %v899
      %v902 = vunpack.c.l.s4 858989090
      %v903 = vunpack.c.0.s8 %v902
      %v904 = vperm.slane %v878, %v903
      %v911 = vmul.f32 %v867, %v884
      %v912 = vmul.f32 %v868, %v888
      %v913 = vmul.f32 %v869, %v892
      %v914 = vmul.f32 %v870, %v896
      %v915 = vmul.f32 %v871, %v900
      %v916 = vmul.f32 %v872, %v904
      %v917 = vadd.f32 %v861, %v911
      %v918 = vadd.f32 %v862, %v912
      %v919 = vadd.f32 %v863, %v913
      %v920 = vadd.f32 %v864, %v914
      %v921 = vadd.f32 %v865, %v915
      %v922 = vadd.f32 %v866, %v916
      %v923 = vmul.f32 %v596, %v687
      %v924 = vmul.f32 %v597, %v688
      %v925 = vmul.f32 %v598, %v689
      %v926 = vmul.f32 %v599, %v690
      %v927 = vmul.f32 %v600, %v691
      %v928 = vmul.f32 %v601, %v692
      %s929 = scalar_lea.vmem %s233, 5
      %v930 = vld [vmem:[%s929] ss:$8 sm:$0xf]
      %v931 = vld [vmem:[%s929] ss:$8 sm:$0xf0]
      %v932 = vor.u32 %v930, %v931
      %s933 = scalar_lea.vmem %s233, 69
      %v934 = vld [vmem:[%s933] ss:$8 sm:$0xf]
      %v938 = vunpack.c.l.s4 286326784
      %v939 = vunpack.c.0.s8 %v938
      %v940 = vperm.slane %v932, %v939
      %v942 = vunpack.c.l.s4 858989090
      %v943 = vunpack.c.0.s8 %v942
      %v944 = vperm.slane %v932, %v943
      %v946 = vunpack.c.l.s4 1431651396
      %v947 = vunpack.c.0.s8 %v946
      %v948 = vperm.slane %v932, %v947
      %v950 = vunpack.c.l.s4 2004313702
      %v951 = vunpack.c.0.s8 %v950
      %v952 = vperm.slane %v932, %v951
      %v954 = vunpack.c.l.s4 286326784
      %v955 = vunpack.c.0.s8 %v954
      %v956 = vperm.slane %v934, %v955
      %v958 = vunpack.c.l.s4 858989090
      %v959 = vunpack.c.0.s8 %v958
      %v960 = vperm.slane %v934, %v959
      %v967 = vmul.f32 %v923, %v940
      %v968 = vmul.f32 %v924, %v944
      %v969 = vmul.f32 %v925, %v948
      %v970 = vmul.f32 %v926, %v952
      %v971 = vmul.f32 %v927, %v956
      %v972 = vmul.f32 %v928, %v960
      %v973 = vadd.f32 %v917, %v967
      %v974 = vadd.f32 %v918, %v968
      %v975 = vadd.f32 %v919, %v969
      %v976 = vadd.f32 %v920, %v970
      %v977 = vadd.f32 %v921, %v971
      %v978 = vadd.f32 %v922, %v972
      %v979 = vmul.f32 %v602, %v614
      %v980 = vmul.f32 %v603, %v615
      %v981 = vmul.f32 %v604, %v616
      %v982 = vmul.f32 %v605, %v617
      %v983 = vmul.f32 %v606, %v618
      %v984 = vmul.f32 %v607, %v619
      %s985 = scalar_lea.vmem %s233, 6
      %v986 = vld [vmem:[%s985] ss:$8 sm:$0xf]
      %v987 = vld [vmem:[%s985] ss:$8 sm:$0xf0]
      %v988 = vor.u32 %v986, %v987
      %s989 = scalar_lea.vmem %s233, 70
      %v990 = vld [vmem:[%s989] ss:$8 sm:$0xf]
      %v994 = vunpack.c.l.s4 286326784
      %v995 = vunpack.c.0.s8 %v994
      %v996 = vperm.slane %v988, %v995
      %v998 = vunpack.c.l.s4 858989090
      %v999 = vunpack.c.0.s8 %v998
      %v1000 = vperm.slane %v988, %v999
      %v1002 = vunpack.c.l.s4 1431651396
      %v1003 = vunpack.c.0.s8 %v1002
      %v1004 = vperm.slane %v988, %v1003
      %v1006 = vunpack.c.l.s4 2004313702
      %v1007 = vunpack.c.0.s8 %v1006
      %v1008 = vperm.slane %v988, %v1007
      %v1010 = vunpack.c.l.s4 286326784
      %v1011 = vunpack.c.0.s8 %v1010
      %v1012 = vperm.slane %v990, %v1011
      %v1014 = vunpack.c.l.s4 858989090
      %v1015 = vunpack.c.0.s8 %v1014
      %v1016 = vperm.slane %v990, %v1015
      %v1023 = vmul.f32 %v979, %v996
      %v1024 = vmul.f32 %v980, %v1000
      %v1025 = vmul.f32 %v981, %v1004
      %v1026 = vmul.f32 %v982, %v1008
      %v1027 = vmul.f32 %v983, %v1012
      %v1028 = vmul.f32 %v984, %v1016
      %v1029 = vadd.f32 %v973, %v1023
      %v1030 = vadd.f32 %v974, %v1024
      %v1031 = vadd.f32 %v975, %v1025
      %v1032 = vadd.f32 %v976, %v1026
      %v1033 = vadd.f32 %v977, %v1027
      %v1034 = vadd.f32 %v978, %v1028
      %v1035 = vmul.f32 %v602, %v687
      %v1036 = vmul.f32 %v603, %v688
      %v1037 = vmul.f32 %v604, %v689
      %v1038 = vmul.f32 %v605, %v690
      %v1039 = vmul.f32 %v606, %v691
      %v1040 = vmul.f32 %v607, %v692
      %s1041 = scalar_lea.vmem %s233, 7
      %v1042 = vld [vmem:[%s1041] ss:$8 sm:$0xf]
      %v1043 = vld [vmem:[%s1041] ss:$8 sm:$0xf0]
      %v1044 = vor.u32 %v1042, %v1043
      %s1045 = scalar_lea.vmem %s233, 71
      %v1046 = vld [vmem:[%s1045] ss:$8 sm:$0xf]
      %v1050 = vunpack.c.l.s4 286326784
      %v1051 = vunpack.c.0.s8 %v1050
      %v1052 = vperm.slane %v1044, %v1051
      %v1054 = vunpack.c.l.s4 858989090
      %v1055 = vunpack.c.0.s8 %v1054
      %v1056 = vperm.slane %v1044, %v1055
      %v1058 = vunpack.c.l.s4 1431651396
      %v1059 = vunpack.c.0.s8 %v1058
      %v1060 = vperm.slane %v1044, %v1059
      %v1062 = vunpack.c.l.s4 2004313702
      %v1063 = vunpack.c.0.s8 %v1062
      %v1064 = vperm.slane %v1044, %v1063
      %v1066 = vunpack.c.l.s4 286326784
      %v1067 = vunpack.c.0.s8 %v1066
      %v1068 = vperm.slane %v1046, %v1067
      %v1070 = vunpack.c.l.s4 858989090
      %v1071 = vunpack.c.0.s8 %v1070
      %v1072 = vperm.slane %v1046, %v1071
      %v1079 = vmul.f32 %v1035, %v1052
      %v1080 = vmul.f32 %v1036, %v1056
      %v1081 = vmul.f32 %v1037, %v1060
      %v1082 = vmul.f32 %v1038, %v1064
      %v1083 = vmul.f32 %v1039, %v1068
      %v1084 = vmul.f32 %v1040, %v1072
      %v1085 = vadd.f32 %v1029, %v1079
      %v1086 = vadd.f32 %v1030, %v1080
      %v1087 = vadd.f32 %v1031, %v1081
      %v1088 = vadd.f32 %v1032, %v1082
      %v1089 = vadd.f32 %v1033, %v1083
      %v1090 = vadd.f32 %v1034, %v1084
      %1097 = vst [vmem:[#allocation1] sm:$0xff] %v1085
      %1098 = vst [vmem:[#allocation1 + $0x8] sm:$0xff] %v1086
      %1099 = vst [vmem:[#allocation1 + $0x10] sm:$0xff] %v1087
      %1100 = vst [vmem:[#allocation1 + $0x18] sm:$0xff] %v1088
      %1101 = vst [vmem:[#allocation1 + $0x20] sm:$0xff] %v1089
      %1102 = vst [vmem:[#allocation1 + $0x28] sm:$0xff] %v1090
      %s1103 = scalar_lea.vmem [#allocation1], 2
      %v1104 = vld [vmem:[%s1103] ss:$4 sm:$0xff]
      %s1105 = scalar_lea.vmem [#allocation1], 34
      %v1106 = vld [vmem:[%s1105] ss:$4 sm:$0xff]
      %1109 = vst [vmem:[%s246] sm:$0xff] %v1104
      %v1110 = vlaneseq
      %vm1111 = vcmp.ge.s32.totalorder %v1110, 0
      %vm1112 = vcmp.lt.s32.totalorder %v1110, 512
      %vm1113 = vmand %vm1111, %vm1112
      %1114 = vst.msk [vmem:[%s246 + $0x8] sm:$0xf] %vm1113, %v1106
      %s1115 = smul.u32 12, %s19
      %p1116 = scmp.lt.s32.totalorder %s18, 1
      %s1117 = scalar_select %p1116, %s18, 1
      %p1118 = scmp.lt.s32.totalorder %s20, 2
      %s1119 = scalar_select %p1118, %s20, 2
      %p1120 = scmp.lt.s32.totalorder %s1115, 11
      %s1121 = scalar_select %p1120, %s1115, 11
      %s1122 = smul.addr %s1119, 12
      %s1123 = sadd.s32 %s1121, %s1122
      %s1124 = smul.addr %s1117, 36
      %s1125 = sadd.s32 %s1123, %s1124
      %s1126 = scalar_lea.vmem %s2, %s1125
      // Predicated region
      $region29: #{spatial_transformer_forward.3} parent=27 // pred_check
        %p1127 = pneg %p112
      $region30: #{spatial_transformer_forward.3} parent=27 // pred_check_branch
        %1129 = sbr.rel (%p1127) target = $region32
      $region31: #{spatial_transformer_forward.3} parent=27 // pred_region
        %s1130 = smul.u32 12, %s19
      $region32: #{spatial_transformer_forward.3} parent=27 // pred_fallthru
        _
    $region28: #{spatial_transformer_forward.3} parent=5 // pred_fallthru
      _
    %p1131 = scmp.le.s32.totalorder 2, %s8
    // Predicated region
    $region33: #{spatial_transformer_forward.3} parent=5 // pred_check
      %p1132 = pneg %p1131
    $region34: #{spatial_transformer_forward.3} parent=5 // pred_check_branch
      %1134 = sbr.rel (%p1132) target = $region36
    $region35: #{spatial_transformer_forward.3} parent=5 // pred_region
      %s1135 = ssub.s32 %s8, 2
      // Predicated region
      $region37: #{spatial_transformer_forward.3} parent=35 // pred_check
        %p1136 = pneg %p118
      $region38: #{spatial_transformer_forward.3} parent=35 // pred_check_branch
        %1138 = sbr.rel (%p1136) target = $region40
      $region39: #{spatial_transformer_forward.3} parent=35 // pred_region
        %s1139 = smul.u32 12, %s22
        %p1140 = scmp.lt.s32.totalorder %s21, 1
        %s1141 = scalar_select %p1140, %s21, 1
        %p1142 = scmp.lt.s32.totalorder %s23, 2
        %s1143 = scalar_select %p1142, %s23, 2
        %p1144 = scmp.lt.s32.totalorder %s1139, 11
        %s1145 = scalar_select %p1144, %s1139, 11
        %s1146 = smul.addr %s1143, 12
        %s1147 = sadd.s32 %s1145, %s1146
        %s1148 = smul.addr %s1141, 36
        %s1149 = sadd.s32 %s1147, %s1148
        %s1150 = scalar_lea.vmem %s2, %s1149
      $region40: #{spatial_transformer_forward.3} parent=35 // pred_fallthru
        _
    $region36: #{spatial_transformer_forward.3} parent=5 // pred_fallthru
      _
  $region6: #{spatial_transformer_forward.3} parent=0 // loop_footer
    %s12 = sadd.s32 1, %s8
  $region7: #{spatial_transformer_forward.3} parent=0 // loop_footer_branch
    %7 = sbr.rel target = $region3
  $region8: #{spatial_transformer_forward.3} parent=0 // loop_exit
    _

</llo_original>
